<compile_context>
chip_gen: v5e
topology: v5e:2x2
jax: 0.10.0
libtpu: 0.0.40
codegen_flags: <defaults>
</compile_context>

<pallas_src>
import functools

import jax
import jax.numpy as jnp
from jax.experimental import pallas as pl
from jax.experimental.pallas import tpu as pltpu

NEG_INF = float("-inf")
LEAKY_SLOPE = 0.01  # nn.LeakyReLU default


# ----------------------------------------------------------------------------- kernel
def _tfa_kernel(x_ref, w1_ref, w2_ref, o_ref, *, seq_len):
    # x_ref:  [pp, n*s, c]   pp parts of this grid step, batch folded into time
    # w1_ref: [pp, 2h, 3c]   fused first convs (rows 0:h -> 3x1 branch, h:2h -> 3x3)
    # w2_ref: [pp, 2c, 4h]   fused block-structured second convs
    # o_ref:  [pp, n, c]     per-part, per-batch temporal max
    pp, ns, c = x_ref.shape
    n = o_ref.shape[1]
    s = seq_len
    h = w1_ref.shape[1] // 2

    x = x_ref[...]
    w1 = w1_ref[...]
    w2 = w2_ref[...]

    def seg_pos(shape):
        # position within each length-s segment of the folded (n*s) axis
        t = jax.lax.broadcasted_iota(jnp.int32, shape, 1)
        if s & (s - 1) == 0:  # power-of-two fast path (bitwise AND, pure VPU)
            return jnp.bitwise_and(t, s - 1)
        # general s: float divide is exact for these tiny index ranges
        return t - (t.astype(jnp.float32) / float(s)).astype(jnp.int32) * s

    def shifted(a, pos, d):
        # r[..., t, :] == a[..., t+d, :] (wrapped); ok marks in-segment positions
        r = pltpu.roll(a, (-d) % a.shape[1], axis=1)
        q = pos + d
        return r, (q >= 0) & (q < s)

    pos_x = seg_pos(x.shape)

    def shift_both(d):
        r, ok = shifted(x, pos_x, d)
        return jnp.where(ok, r, 0.0), jnp.where(ok, r, NEG_INF)

    xm2z, xm2n = shift_both(-2)
    xm1z, xm1n = shift_both(-1)
    xp1z, xp1n = shift_both(1)
    xp2z, xp2n = shift_both(2)

    # ---- fused first convs (both branches): one im2col matmul per part -----------
    x3 = jnp.concatenate([xm1z, x, xp1z], axis=-1)                   # [pp, ns, 3c]
    hid = jnp.einsum("pnk,phk->pnh", x3.astype(w1.dtype), w1,
                     preferred_element_type=jnp.float32)             # [pp, ns, 2h]
    hid = jnp.where(hid >= 0.0, hid, LEAKY_SLOPE * hid)              # LeakyReLU

    h31 = hid[..., :h]
    h33 = hid[..., h:]
    pos_h = seg_pos(h33.shape)
    h33m, okm = shifted(h33, pos_h, -1)
    h33p, okp = shifted(h33, pos_h, 1)
    h33m = jnp.where(okm, h33m, 0.0)
    h33p = jnp.where(okp, h33p, 0.0)

    # ---- fused second convs: both branches' logits from one matmul ---------------
    h4 = jnp.concatenate([h31, h33m, h33, h33p], axis=-1)            # [pp, ns, 4h]
    logits = jnp.einsum("pnk,pck->pnc", h4.astype(w2.dtype), w2,
                        preferred_element_type=jnp.float32)          # [pp, ns, 2c]
    scores = jax.nn.sigmoid(logits)
    sc31 = scores[..., :c]
    sc33 = scores[..., c:]

    # ---- pooling (avg with count_include_pad, max with -inf padding) -------------
    av3 = (xm1z + x + xp1z) * (1.0 / 3.0)
    mx3 = jnp.maximum(jnp.maximum(xm1n, x), xp1n)
    av5 = (xm2z + xm1z + x + xp1z + xp2z) * (1.0 / 5.0)
    mx5 = jnp.maximum(jnp.maximum(mx3, xm2n), xp2n)

    f = (av3 + mx3) * sc31 + (av5 + mx5) * sc33                      # [pp, ns, c]

    # ---- temporal max over each length-s segment ----------------------------------
    for b in range(n):  # n is small; static, tile-friendly sublane slices
        o_ref[:, b, :] = jnp.max(f[:, b * s:(b + 1) * s, :], axis=1)


# ----------------------------------------------------------------------------- wrapper
def _pack_weights(params, dtype):
    """Pack per-part conv weights into the two fused matmul operands."""
    w1a = params["w1_31"]  # [p, 3, h, c]  (tap, out, in)
    w2a = params["w2_31"]  # [p, c, h]
    w1b = params["w1_33"]  # [p, 3, h, c]
    w2b = params["w2_33"]  # [p, 3, c, h]
    p, _, h, c = w1a.shape

    # W1 [p, 2h, 3c]:  H[t] = W1 @ concat_k x[t+k-1];  rows 0:h -> 3x1, h:2h -> 3x3.
    w1a_f = jnp.transpose(w1a, (0, 2, 1, 3)).reshape(p, h, 3 * c)
    w1b_f = jnp.transpose(w1b, (0, 2, 1, 3)).reshape(p, h, 3 * c)
    w1 = jnp.concatenate([w1a_f, w1b_f], axis=1)

    # W2 [p, 2c, 4h]:  logits = W2 @ concat(h31, h33[t-1], h33[t], h33[t+1]).
    # Block structure keeps the two branches' logits separate (rows 0:c vs c:2c).
    w2b_f = jnp.transpose(w2b, (0, 2, 1, 3)).reshape(p, c, 3 * h)
    top = jnp.concatenate([w2a, jnp.zeros((p, c, 3 * h), w2a.dtype)], axis=2)
    bot = jnp.concatenate([jnp.zeros((p, c, h), w2b.dtype), w2b_f], axis=2)
    w2 = jnp.concatenate([top, bot], axis=1)
    return w1.astype(dtype), w2.astype(dtype)


def temporal_feature_aggregator(x, params, *, matmul_dtype=jnp.float32):
    """x: [n, s, c, p] float32 -> [n, p, c] float32."""
    n, s, c, p = x.shape
    hidden = params["w1_31"].shape[2]
    w1, w2 = _pack_weights(params, matmul_dtype)

    # [n, s, c, p] -> [p, n*s, c]: parts lead (per-part weights), batch folded into time.
    x_resh = jnp.transpose(x, (3, 0, 1, 2)).reshape(p, n * s, c).astype(jnp.float32)

    # 2 grid steps so v7x's two TensorCores split the parts; extra step is ~0.35 us
    # on v5e/v6e. All inputs/outputs fit VMEM with huge headroom on every generation.
    grid_blocks = 2 if p % 2 == 0 else 1
    pp = p // grid_blocks

    out_pnc = pl.pallas_call(
        functools.partial(_tfa_kernel, seq_len=s),
        out_shape=jax.ShapeDtypeStruct((p, n, c), jnp.float32),
        grid_spec=pltpu.PrefetchScalarGridSpec(
            num_scalar_prefetch=0,
            grid=(grid_blocks,),
            in_specs=[
                pl.BlockSpec((pp, n * s, c), lambda i: (i, 0, 0)),
                pl.BlockSpec((pp, 2 * hidden, 3 * c), lambda i: (i, 0, 0)),
                pl.BlockSpec((pp, 2 * c, 4 * hidden), lambda i: (i, 0, 0)),
            ],
            out_specs=pl.BlockSpec((pp, n, c), lambda i: (i, 0, 0)),
        ),
        compiler_params=pltpu.CompilerParams(dimension_semantics=("parallel",)),
    )(x_resh, w1, w2)

    return jnp.transpose(out_pnc, (1, 0, 2))  # [n, p, c]  (4 KiB; free in XLA)


# ----------------------------------------------------------------------------- reference
def _shift_s(a, d, pad_val):
    """result[..., t] = a[..., t + d], padded with pad_val (static d)."""
    if d == 0:
        return a
    S = a.shape[-1]
    pad = jnp.full(a.shape[:-1] + (abs(d),), pad_val, dtype=a.dtype)
    if d > 0:
        return jnp.concatenate([a[..., d:], pad], axis=-1)
    return jnp.concatenate([pad, a[..., : S + d]], axis=-1)


def ref_forward(x, params):
    """Pure-JAX reference replicating the PyTorch forward."""
    xp = jnp.transpose(x, (3, 0, 2, 1)).astype(jnp.float32)  # [p, n, c, s]
    w1a, w2a = params["w1_31"], params["w2_31"]
    w1b, w2b = params["w1_33"], params["w2_33"]
    hi = jax.lax.Precision.HIGHEST

    h = sum(
        jnp.einsum("phc,pncs->pnhs", w1a[:, k], _shift_s(xp, k - 1, 0.0), precision=hi)
        for k in range(3)
    )
    h = jnp.where(h >= 0.0, h, LEAKY_SLOPE * h)
    sc31 = jax.nn.sigmoid(jnp.einsum("pch,pnhs->pncs", w2a, h, precision=hi))
    av3 = (_shift_s(xp, -1, 0.0) + xp + _shift_s(xp, 1, 0.0)) / 3.0
    mx3 = jnp.maximum(
        jnp.maximum(_shift_s(xp, -1, NEG_INF), xp), _shift_s(xp, 1, NEG_INF)
    )
    f31 = (av3 + mx3) * sc31

    h2 = sum(
        jnp.einsum("phc,pncs->pnhs", w1b[:, k], _shift_s(xp, k - 1, 0.0), precision=hi)
        for k in range(3)
    )
    h2 = jnp.where(h2 >= 0.0, h2, LEAKY_SLOPE * h2)
    logits33 = sum(
        jnp.einsum("pch,pnhs->pncs", w2b[:, k], _shift_s(h2, k - 1, 0.0), precision=hi)
        for k in range(3)
    )
    sc33 = jax.nn.sigmoid(logits33)
    av5 = sum(_shift_s(xp, d, 0.0) for d in (-2, -1, 0, 1, 2)) / 5.0
    mx5 = xp
    for d in (-2, -1, 1, 2):
        mx5 = jnp.maximum(mx5, _shift_s(xp, d, NEG_INF))
    f33 = (av5 + mx5) * sc33

    ret = jnp.max(f31 + f33, axis=-1)  # [p, n, c]
    return jnp.transpose(ret, (1, 0, 2))  # [n, p, c]


def init_params(key, in_channels, squeeze, parts_num):
    hidden = in_channels // squeeze
    k1, k2, k3, k4 = jax.random.split(key, 4)
    scale = 0.1
    return {
        # per-part weight stacks (clones -> independent weights per part)
        "w1_31": scale * jax.random.normal(k1, (parts_num, 3, hidden, in_channels), jnp.float32),
        "w2_31": scale * jax.random.normal(k2, (parts_num, in_channels, hidden), jnp.float32),
        "w1_33": scale * jax.random.normal(k3, (parts_num, 3, hidden, in_channels), jnp.float32),
        "w2_33": scale * jax.random.normal(k4, (parts_num, 3, in_channels, hidden), jnp.float32),
    }


if __name__ == "__main__":
    n, s, c, p = 2, 8, 32, 16  # batch, seq, in_channels, parts_num
    squeeze = 4

    key = jax.random.PRNGKey(0)
    kx, kp = jax.random.split(key)
    x = jax.random.normal(kx, (n, s, c, p), jnp.float32)
    params = init_params(kp, c, squeeze, p)

    out = jax.block_until_ready(temporal_feature_aggregator(x, params))
    ref = jax.block_until_ready(ref_forward(x, params))

    assert out.shape == (n, p, c), out.shape
    max_err = float(jnp.max(jnp.abs(out - ref)))
    assert max_err < 1e-3, f"mismatch vs reference: {max_err}"
    print("KERNEL_OK")
</pallas_src>

<mosaic_0001>
module attributes {stable_mosaic.version = 11 : i64} {
  func.func @_tfa_kernel(%arg0: i32, %arg1: memref<8x16x32xf32, #tpu.memory_space<vmem>>, %arg2: memref<8x16x96xf32, #tpu.memory_space<vmem>>, %arg3: memref<8x64x32xf32, #tpu.memory_space<vmem>>, %arg4: memref<8x2x32xf32, #tpu.memory_space<vmem>>) attributes {dimension_semantics = [#tpu.dimension_semantics<parallel>], iteration_bounds = array<i64: 2>, scalar_prefetch = 0 : i64, scratch_operands = 0 : i64, tpu.core_type = #tpu.core_type<tc>, window_params = [{transform_indices = @transform_0, window_bounds = array<i64: 8, 16, 32>}, {transform_indices = @transform_1, window_bounds = array<i64: 8, 16, 96>}, {transform_indices = @transform_2, window_bounds = array<i64: 8, 64, 32>}, {transform_indices = @transform_3, window_bounds = array<i64: 8, 2, 32>}]} {
    %c0 = arith.constant 0 : index
    %c0_0 = arith.constant 0 : index
    %c0_1 = arith.constant 0 : index
    %0 = vector.load %arg1[%c0, %c0_0, %c0_1] : memref<8x16x32xf32, #tpu.memory_space<vmem>>, vector<8x16x32xf32>
    %c0_2 = arith.constant 0 : index
    %c0_3 = arith.constant 0 : index
    %c0_4 = arith.constant 0 : index
    %1 = vector.load %arg2[%c0_2, %c0_3, %c0_4] : memref<8x16x96xf32, #tpu.memory_space<vmem>>, vector<8x16x96xf32>
    %c0_5 = arith.constant 0 : index
    %c0_6 = arith.constant 0 : index
    %c0_7 = arith.constant 0 : index
    %2 = vector.load %arg3[%c0_5, %c0_6, %c0_7] : memref<8x64x32xf32, #tpu.memory_space<vmem>>, vector<8x64x32xf32>
    %3 = tpu.iota {dimensions = array<i32: 1>} : vector<8x16x32xi32>
    %c7_i32 = arith.constant 7 : i32
    %4 = vector.broadcast %c7_i32 : i32 to vector<8x16x32xi32>
    %5 = arith.andi %3, %4 : vector<8x16x32xi32>
    %c2_i32 = arith.constant 2 : i32
    %6 = tpu.dynamic_rotate %0 by %c2_i32 dim 1 : vector<8x16x32xf32>, i32 -> vector<8x16x32xf32>
    %c-2_i32 = arith.constant -2 : i32
    %7 = vector.broadcast %c-2_i32 : i32 to vector<8x16x32xi32>
    %8 = arith.addi %5, %7 : vector<8x16x32xi32>
    %c0_i32 = arith.constant 0 : i32
    %9 = vector.broadcast %c0_i32 : i32 to vector<8x16x32xi32>
    %10 = arith.cmpi sge, %8, %9 : vector<8x16x32xi32>
    %c8_i32 = arith.constant 8 : i32
    %11 = vector.broadcast %c8_i32 : i32 to vector<8x16x32xi32>
    %12 = arith.cmpi slt, %8, %11 : vector<8x16x32xi32>
    %13 = arith.andi %10, %12 : vector<8x16x32xi1>
    %cst = arith.constant 0.000000e+00 : f32
    %14 = vector.broadcast %cst : f32 to vector<8x16x32xf32>
    %15 = arith.select %13, %6, %14 : vector<8x16x32xi1>, vector<8x16x32xf32>
    %cst_8 = arith.constant 0xFF800000 : f32
    %16 = vector.broadcast %cst_8 : f32 to vector<8x16x32xf32>
    %17 = arith.select %13, %6, %16 : vector<8x16x32xi1>, vector<8x16x32xf32>
    %c1_i32 = arith.constant 1 : i32
    %18 = tpu.dynamic_rotate %0 by %c1_i32 dim 1 : vector<8x16x32xf32>, i32 -> vector<8x16x32xf32>
    %c-1_i32 = arith.constant -1 : i32
    %19 = vector.broadcast %c-1_i32 : i32 to vector<8x16x32xi32>
    %20 = arith.addi %5, %19 : vector<8x16x32xi32>
    %c0_i32_9 = arith.constant 0 : i32
    %21 = vector.broadcast %c0_i32_9 : i32 to vector<8x16x32xi32>
    %22 = arith.cmpi sge, %20, %21 : vector<8x16x32xi32>
    %c8_i32_10 = arith.constant 8 : i32
    %23 = vector.broadcast %c8_i32_10 : i32 to vector<8x16x32xi32>
    %24 = arith.cmpi slt, %20, %23 : vector<8x16x32xi32>
    %25 = arith.andi %22, %24 : vector<8x16x32xi1>
    %cst_11 = arith.constant 0.000000e+00 : f32
    %26 = vector.broadcast %cst_11 : f32 to vector<8x16x32xf32>
    %27 = arith.select %25, %18, %26 : vector<8x16x32xi1>, vector<8x16x32xf32>
    %cst_12 = arith.constant 0xFF800000 : f32
    %28 = vector.broadcast %cst_12 : f32 to vector<8x16x32xf32>
    %29 = arith.select %25, %18, %28 : vector<8x16x32xi1>, vector<8x16x32xf32>
    %c15_i32 = arith.constant 15 : i32
    %30 = tpu.dynamic_rotate %0 by %c15_i32 dim 1 : vector<8x16x32xf32>, i32 -> vector<8x16x32xf32>
    %c1_i32_13 = arith.constant 1 : i32
    %31 = vector.broadcast %c1_i32_13 : i32 to vector<8x16x32xi32>
    %32 = arith.addi %5, %31 : vector<8x16x32xi32>
    %c0_i32_14 = arith.constant 0 : i32
    %33 = vector.broadcast %c0_i32_14 : i32 to vector<8x16x32xi32>
    %34 = arith.cmpi sge, %32, %33 : vector<8x16x32xi32>
    %c8_i32_15 = arith.constant 8 : i32
    %35 = vector.broadcast %c8_i32_15 : i32 to vector<8x16x32xi32>
    %36 = arith.cmpi slt, %32, %35 : vector<8x16x32xi32>
    %37 = arith.andi %34, %36 : vector<8x16x32xi1>
    %cst_16 = arith.constant 0.000000e+00 : f32
    %38 = vector.broadcast %cst_16 : f32 to vector<8x16x32xf32>
    %39 = arith.select %37, %30, %38 : vector<8x16x32xi1>, vector<8x16x32xf32>
    %cst_17 = arith.constant 0xFF800000 : f32
    %40 = vector.broadcast %cst_17 : f32 to vector<8x16x32xf32>
    %41 = arith.select %37, %30, %40 : vector<8x16x32xi1>, vector<8x16x32xf32>
    %c14_i32 = arith.constant 14 : i32
    %42 = tpu.dynamic_rotate %0 by %c14_i32 dim 1 : vector<8x16x32xf32>, i32 -> vector<8x16x32xf32>
    %c2_i32_18 = arith.constant 2 : i32
    %43 = vector.broadcast %c2_i32_18 : i32 to vector<8x16x32xi32>
    %44 = arith.addi %5, %43 : vector<8x16x32xi32>
    %c0_i32_19 = arith.constant 0 : i32
    %45 = vector.broadcast %c0_i32_19 : i32 to vector<8x16x32xi32>
    %46 = arith.cmpi sge, %44, %45 : vector<8x16x32xi32>
    %c8_i32_20 = arith.constant 8 : i32
    %47 = vector.broadcast %c8_i32_20 : i32 to vector<8x16x32xi32>
    %48 = arith.cmpi slt, %44, %47 : vector<8x16x32xi32>
    %49 = arith.andi %46, %48 : vector<8x16x32xi1>
    %cst_21 = arith.constant 0.000000e+00 : f32
    %50 = vector.broadcast %cst_21 : f32 to vector<8x16x32xf32>
    %51 = arith.select %49, %42, %50 : vector<8x16x32xi1>, vector<8x16x32xf32>
    %cst_22 = arith.constant 0xFF800000 : f32
    %52 = vector.broadcast %cst_22 : f32 to vector<8x16x32xf32>
    %53 = arith.select %49, %42, %52 : vector<8x16x32xi1>, vector<8x16x32xf32>
    %54 = tpu.concatenate %27, %0, %39 in 2 : vector<8x16x32xf32>, vector<8x16x32xf32>, vector<8x16x32xf32> -> vector<8x16x96xf32>
    "tpu.trace_start"() <{level = 10 : i32, message = "pnk,phk->pnh"}> : () -> ()
    %cst_23 = arith.constant dense<0.000000e+00> : vector<8x16x16xf32>
    %55 = tpu.matmul %54, %1, %cst_23 {dimension_numbers = #tpu.dot_dimension_numbers<[2], [2], [1], [1], [0, 0, 0, 1, 1, 1], [0], [0]>} : vector<8x16x96xf32>, vector<8x16x96xf32>, vector<8x16x16xf32> -> vector<8x16x16xf32>
    %cst_24 = arith.constant 0.000000e+00 : f32
    "tpu.trace_stop"() : () -> ()
    %56 = vector.broadcast %cst_24 : f32 to vector<8x16x16xf32>
    %57 = arith.cmpf oge, %55, %56 : vector<8x16x16xf32>
    %cst_25 = arith.constant 0.00999999977 : f32
    %58 = vector.broadcast %cst_25 : f32 to vector<8x16x16xf32>
    %59 = arith.mulf %58, %55 : vector<8x16x16xf32>
    %60 = arith.select %57, %55, %59 : vector<8x16x16xi1>, vector<8x16x16xf32>
    %61 = vector.extract_strided_slice %60 {offsets = [0, 0, 0], sizes = [8, 16, 8], strides = [1, 1, 1]} : vector<8x16x16xf32> to vector<8x16x8xf32>
    %62 = vector.extract_strided_slice %60 {offsets = [0, 0, 8], sizes = [8, 16, 8], strides = [1, 1, 1]} : vector<8x16x16xf32> to vector<8x16x8xf32>
    %63 = tpu.iota {dimensions = array<i32: 1>} : vector<8x16x8xi32>
    %c7_i32_26 = arith.constant 7 : i32
    %64 = vector.broadcast %c7_i32_26 : i32 to vector<8x16x8xi32>
    %65 = arith.andi %63, %64 : vector<8x16x8xi32>
    %c1_i32_27 = arith.constant 1 : i32
    %66 = tpu.dynamic_rotate %62 by %c1_i32_27 dim 1 : vector<8x16x8xf32>, i32 -> vector<8x16x8xf32>
    %c-1_i32_28 = arith.constant -1 : i32
    %67 = vector.broadcast %c-1_i32_28 : i32 to vector<8x16x8xi32>
    %68 = arith.addi %65, %67 : vector<8x16x8xi32>
    %c0_i32_29 = arith.constant 0 : i32
    %69 = vector.broadcast %c0_i32_29 : i32 to vector<8x16x8xi32>
    %70 = arith.cmpi sge, %68, %69 : vector<8x16x8xi32>
    %c8_i32_30 = arith.constant 8 : i32
    %71 = vector.broadcast %c8_i32_30 : i32 to vector<8x16x8xi32>
    %72 = arith.cmpi slt, %68, %71 : vector<8x16x8xi32>
    %73 = arith.andi %70, %72 : vector<8x16x8xi1>
    %c15_i32_31 = arith.constant 15 : i32
    %74 = tpu.dynamic_rotate %62 by %c15_i32_31 dim 1 : vector<8x16x8xf32>, i32 -> vector<8x16x8xf32>
    %c1_i32_32 = arith.constant 1 : i32
    %75 = vector.broadcast %c1_i32_32 : i32 to vector<8x16x8xi32>
    %76 = arith.addi %65, %75 : vector<8x16x8xi32>
    %c0_i32_33 = arith.constant 0 : i32
    %77 = vector.broadcast %c0_i32_33 : i32 to vector<8x16x8xi32>
    %78 = arith.cmpi sge, %76, %77 : vector<8x16x8xi32>
    %c8_i32_34 = arith.constant 8 : i32
    %79 = vector.broadcast %c8_i32_34 : i32 to vector<8x16x8xi32>
    %80 = arith.cmpi slt, %76, %79 : vector<8x16x8xi32>
    %81 = arith.andi %78, %80 : vector<8x16x8xi1>
    %cst_35 = arith.constant 0.000000e+00 : f32
    %82 = vector.broadcast %cst_35 : f32 to vector<8x16x8xf32>
    %83 = arith.select %73, %66, %82 : vector<8x16x8xi1>, vector<8x16x8xf32>
    %cst_36 = arith.constant 0.000000e+00 : f32
    %84 = vector.broadcast %cst_36 : f32 to vector<8x16x8xf32>
    %85 = arith.select %81, %74, %84 : vector<8x16x8xi1>, vector<8x16x8xf32>
    %86 = tpu.concatenate %61, %83, %62, %85 in 2 : vector<8x16x8xf32>, vector<8x16x8xf32>, vector<8x16x8xf32>, vector<8x16x8xf32> -> vector<8x16x32xf32>
    "tpu.trace_start"() <{level = 10 : i32, message = "pnk,pck->pnc"}> : () -> ()
    %cst_37 = arith.constant dense<0.000000e+00> : vector<8x16x64xf32>
    %87 = tpu.matmul %86, %2, %cst_37 {dimension_numbers = #tpu.dot_dimension_numbers<[2], [2], [1], [1], [0, 0, 0, 1, 1, 1], [0], [0]>} : vector<8x16x32xf32>, vector<8x64x32xf32>, vector<8x16x64xf32> -> vector<8x16x64xf32>
    "tpu.trace_stop"() : () -> ()
    %88 = arith.negf %87 : vector<8x16x64xf32>
    %89 = math.exp %88 : vector<8x16x64xf32>
    %cst_38 = arith.constant 1.000000e+00 : f32
    %90 = vector.broadcast %cst_38 : f32 to vector<8x16x64xf32>
    %91 = arith.addf %90, %89 : vector<8x16x64xf32>
    %92 = arith.divf %90, %91 : vector<8x16x64xf32>
    %93 = vector.extract_strided_slice %92 {offsets = [0, 0, 0], sizes = [8, 16, 32], strides = [1, 1, 1]} : vector<8x16x64xf32> to vector<8x16x32xf32>
    %94 = vector.extract_strided_slice %92 {offsets = [0, 0, 32], sizes = [8, 16, 32], strides = [1, 1, 1]} : vector<8x16x64xf32> to vector<8x16x32xf32>
    %95 = arith.addf %27, %0 : vector<8x16x32xf32>
    %96 = arith.addf %95, %39 : vector<8x16x32xf32>
    %cst_39 = arith.constant 0.333333343 : f32
    %97 = vector.broadcast %cst_39 : f32 to vector<8x16x32xf32>
    %98 = arith.mulf %96, %97 : vector<8x16x32xf32>
    %99 = arith.maximumf %29, %0 : vector<8x16x32xf32>
    %100 = arith.maximumf %99, %41 : vector<8x16x32xf32>
    %101 = arith.addf %15, %27 : vector<8x16x32xf32>
    %102 = arith.addf %101, %0 : vector<8x16x32xf32>
    %103 = arith.addf %102, %39 : vector<8x16x32xf32>
    %104 = arith.addf %103, %51 : vector<8x16x32xf32>
    %cst_40 = arith.constant 2.000000e-01 : f32
    %105 = vector.broadcast %cst_40 : f32 to vector<8x16x32xf32>
    %106 = arith.mulf %104, %105 : vector<8x16x32xf32>
    %107 = arith.maximumf %100, %17 : vector<8x16x32xf32>
    %108 = arith.maximumf %107, %53 : vector<8x16x32xf32>
    %109 = arith.addf %98, %100 : vector<8x16x32xf32>
    %110 = arith.mulf %109, %93 : vector<8x16x32xf32>
    %111 = arith.addf %106, %108 : vector<8x16x32xf32>
    %112 = arith.mulf %111, %94 : vector<8x16x32xf32>
    %113 = arith.addf %110, %112 : vector<8x16x32xf32>
    %114 = vector.extract_strided_slice %113 {offsets = [0, 0, 0], sizes = [8, 8, 32], strides = [1, 1, 1]} : vector<8x16x32xf32> to vector<8x8x32xf32>
    %cst_41 = arith.constant dense<0xFF800000> : vector<8x32xf32>
    %115 = vector.multi_reduction <maximumf>, %114, %cst_41 [1] : vector<8x8x32xf32> to vector<8x32xf32>
    %c0_42 = arith.constant 0 : index
    %c0_43 = arith.constant 0 : index
    %c0_44 = arith.constant 0 : index
    %116 = vector.load %arg4[%c0_42, %c0_43, %c0_44] : memref<8x2x32xf32, #tpu.memory_space<vmem>>, vector<8x1x32xf32>
    %117 = vector.shape_cast %116 : vector<8x1x32xf32> to vector<8x32xf32>
    %118 = vector.shape_cast %115 : vector<8x32xf32> to vector<8x1x32xf32>
    tpu.vector_store %arg4[%c0_42, %c0_43, %c0_44], %118 {strides = array<i32>} : memref<8x2x32xf32, #tpu.memory_space<vmem>>, vector<8x1x32xf32>,
    %119 = vector.extract_strided_slice %113 {offsets = [0, 8, 0], sizes = [8, 8, 32], strides = [1, 1, 1]} : vector<8x16x32xf32> to vector<8x8x32xf32>
    %cst_45 = arith.constant dense<0xFF800000> : vector<8x32xf32>
    %120 = vector.multi_reduction <maximumf>, %119, %cst_45 [1] : vector<8x8x32xf32> to vector<8x32xf32>
    %c0_46 = arith.constant 0 : index
    %c1 = arith.constant 1 : index
    %c0_47 = arith.constant 0 : index
    %121 = vector.load %arg4[%c0_46, %c1, %c0_47] : memref<8x2x32xf32, #tpu.memory_space<vmem>>, vector<8x1x32xf32>
    %122 = vector.shape_cast %121 : vector<8x1x32xf32> to vector<8x32xf32>
    %123 = vector.shape_cast %120 : vector<8x32xf32> to vector<8x1x32xf32>
    tpu.vector_store %arg4[%c0_46, %c1, %c0_47], %123 {strides = array<i32>} : memref<8x2x32xf32, #tpu.memory_space<vmem>>, vector<8x1x32xf32>,
    return
  }
  func.func @transform_0(%arg0: i32) -> (i32, i32, i32) {
    %c0_i32 = arith.constant 0 : i32
    %c0_i32_0 = arith.constant 0 : i32
    %c0_i32_1 = arith.constant 0 : i32
    return %arg0, %c0_i32, %c0_i32_0 : i32, i32, i32
  }
  func.func @transform_1(%arg0: i32) -> (i32, i32, i32) {
    %c0_i32 = arith.constant 0 : i32
    %c0_i32_0 = arith.constant 0 : i32
    %c0_i32_1 = arith.constant 0 : i32
    return %arg0, %c0_i32, %c0_i32_0 : i32, i32, i32
  }
  func.func @transform_2(%arg0: i32) -> (i32, i32, i32) {
    %c0_i32 = arith.constant 0 : i32
    %c0_i32_0 = arith.constant 0 : i32
    %c0_i32_1 = arith.constant 0 : i32
    return %arg0, %c0_i32, %c0_i32_0 : i32, i32, i32
  }
  func.func @transform_3(%arg0: i32) -> (i32, i32, i32) {
    %c0_i32 = arith.constant 0 : i32
    %c0_i32_0 = arith.constant 0 : i32
    %c0_i32_1 = arith.constant 0 : i32
    return %arg0, %c0_i32, %c0_i32_0 : i32, i32, i32
  }
}

</mosaic_0001>

<llo_original>
// kernel: tpu_custom_call.1
$region0: #{tpu_custom_call.1}
  #allocation0 [shape = 'u32[]', space=smem, size = 0x4, offset = 0x4, fixed_abs, tag = 'smem constant byte address 0x4 - core index']
  #allocation1 [shape = 'u32[72,128]{1,0:T(1,128)}', space=vmem, size = 0x9000, scoped, tag = 'internal scratch']
  %s0 = inlined_call_operand.vmem [shape: f32[16,16,32], index: 0, kind: input, shape index: {}]
  %s1 = inlined_call_operand.vmem [shape: f32[16,16,96], index: 1, kind: input, shape index: {}]
  %s2 = inlined_call_operand.vmem [shape: f32[16,64,32], index: 2, kind: input, shape index: {}]
  %s3 = inlined_call_operand.hbm [shape: f32[16,2,32], index: 3, kind: output, shape index: {}]
  %s4 = sld [smem:[#allocation0]]
  $region45: #{tpu_custom_call.1} parent=0
    _
  %s6 = ssub.s32 1, %s4
  %s7 = scalar_select 0, %s6, %s4
  $region1: #{tpu_custom_call.1} parent=0
    #allocation2 [shape = 'u8[16384]{0}', space=vmem, size = 0x4000, scoped, tag = 'output window, operand 0']
    #allocation3 [shape = 's32[2]{0}', space=sflag, size = 0x8, scoped, tag = 'scoped memory for tpu_custom_call.1']
    %8 = vsyncpa [#allocation3], 0
    %s9 = scalar_lea.sflag [#allocation3], 1
    %10 = vsyncpa %s9, 0
    loop: start=0, step=1, limit=4
    $region2: #{tpu_custom_call.1} parent=1 // loop_pre_header
      _
    $region3: #{tpu_custom_call.1} parent=1 // loop_header
      %s12 = sphi 0, %s16
      %p13 = scmp.ge.s32.totalorder %s12, 4
      %s22 = sphi 0, %s24
      %s25 = sphi 0, %s22
      %s26 = sphi 0, %s25
      %s42 = sphi 0, %s26
      %s48 = sphi 0, %s50
      %s51 = sphi 0, %s48
      %s52 = sphi 0, %s51
      %s68 = sphi 0, %s52
      %s74 = sphi 0, %s76
      %s77 = sphi 0, %s74
      %s78 = sphi 0, %s77
      %s94 = sphi 0, %s78
      %s100 = sphi 0, %s102
      %s103 = sphi 0, %s100
      %s104 = sphi 0, %s103
      %s120 = sphi 0, %s104
    $region4: #{tpu_custom_call.1} parent=1 // loop_header_branch
      %15 = sbr.rel (%p13) target = $region8
    $region5: #{tpu_custom_call.1} parent=1 // loop_body
      %s17 = ssub.s32 %s12, 1
      %s18 = ssub.s32 %s12, 2
      %s19 = sadd.s32 %s12, 1
      %s20 = ssub.s32 %s12, %s19
      %p21 = scmp.eq.s32.totalorder %s20, 0
      %s23 = sadd.s32 %s22, 1
      %s24 = scalar_select %p21, %s22, %s23
      %p27 = pneg %p21
      %p28 = scmp.eq.s32.totalorder %s12, 1
      %p29 = por %p27, %p28
      %p30 = scmp.ne.s32.totalorder %s22, %s25
      %p31 = scmp.eq.s32.totalorder %s12, 0
      %p32 = por %p30, %p31
      %p33 = scmp.ne.s32.totalorder %s22, %s25
      %p34 = scmp.eq.s32.totalorder %s17, 1
      %p35 = por %p33, %p34
      %p36 = scmp.ne.s32.totalorder %s25, %s26
      %p37 = scmp.eq.s32.totalorder %s17, 0
      %p38 = por %p36, %p37
      %p39 = scmp.ne.s32.totalorder %s25, %s26
      %p40 = scmp.eq.s32.totalorder %s18, 1
      %p41 = por %p39, %p40
      %p43 = scmp.ne.s32.totalorder %s26, %s42
      %p44 = scmp.eq.s32.totalorder %s18, 0
      %p45 = por %p43, %p44
      %s46 = ssub.s32 %s12, %s19
      %p47 = scmp.eq.s32.totalorder %s46, 0
      %s49 = sadd.s32 %s48, 1
      %s50 = scalar_select %p47, %s48, %s49
      %p53 = pneg %p47
      %p54 = scmp.eq.s32.totalorder %s12, 1
      %p55 = por %p53, %p54
      %p56 = scmp.ne.s32.totalorder %s48, %s51
      %p57 = scmp.eq.s32.totalorder %s12, 0
      %p58 = por %p56, %p57
      %p59 = scmp.ne.s32.totalorder %s48, %s51
      %p60 = scmp.eq.s32.totalorder %s17, 1
      %p61 = por %p59, %p60
      %p62 = scmp.ne.s32.totalorder %s51, %s52
      %p63 = scmp.eq.s32.totalorder %s17, 0
      %p64 = por %p62, %p63
      %p65 = scmp.ne.s32.totalorder %s51, %s52
      %p66 = scmp.eq.s32.totalorder %s18, 1
      %p67 = por %p65, %p66
      %p69 = scmp.ne.s32.totalorder %s52, %s68
      %p70 = scmp.eq.s32.totalorder %s18, 0
      %p71 = por %p69, %p70
      %s72 = ssub.s32 %s12, %s19
      %p73 = scmp.eq.s32.totalorder %s72, 0
      %s75 = sadd.s32 %s74, 1
      %s76 = scalar_select %p73, %s74, %s75
      %p79 = pneg %p73
      %p80 = scmp.eq.s32.totalorder %s12, 1
      %p81 = por %p79, %p80
      %p82 = scmp.ne.s32.totalorder %s74, %s77
      %p83 = scmp.eq.s32.totalorder %s12, 0
      %p84 = por %p82, %p83
      %p85 = scmp.ne.s32.totalorder %s74, %s77
      %p86 = scmp.eq.s32.totalorder %s17, 1
      %p87 = por %p85, %p86
      %p88 = scmp.ne.s32.totalorder %s77, %s78
      %p89 = scmp.eq.s32.totalorder %s17, 0
      %p90 = por %p88, %p89
      %p91 = scmp.ne.s32.totalorder %s77, %s78
      %p92 = scmp.eq.s32.totalorder %s18, 1
      %p93 = por %p91, %p92
      %p95 = scmp.ne.s32.totalorder %s78, %s94
      %p96 = scmp.eq.s32.totalorder %s18, 0
      %p97 = por %p95, %p96
      %s98 = ssub.s32 %s12, %s19
      %p99 = scmp.eq.s32.totalorder %s98, 0
      %s101 = sadd.s32 %s100, 1
      %s102 = scalar_select %p99, %s100, %s101
      %p105 = pneg %p99
      %p106 = scmp.eq.s32.totalorder %s12, 1
      %p107 = por %p105, %p106
      %p108 = scmp.ne.s32.totalorder %s100, %s103
      %p109 = scmp.eq.s32.totalorder %s12, 0
      %p110 = por %p108, %p109
      %p111 = scmp.ne.s32.totalorder %s100, %s103
      %p112 = scmp.eq.s32.totalorder %s17, 1
      %p113 = por %p111, %p112
      %p114 = scmp.ne.s32.totalorder %s103, %s104
      %p115 = scmp.eq.s32.totalorder %s17, 0
      %p116 = por %p114, %p115
      %p117 = scmp.ne.s32.totalorder %s103, %s104
      %p118 = scmp.eq.s32.totalorder %s18, 1
      %p119 = por %p117, %p118
      %p121 = scmp.ne.s32.totalorder %s104, %s120
      %p122 = scmp.eq.s32.totalorder %s18, 0
      %p123 = por %p121, %p122
      %p124 = scmp.le.s32.totalorder 1, %s12
      %p125 = scmp.lt.s32.totalorder %s12, 3
      %p126 = pnand %p124, %p125
      %p127 = pneg %p126
      // Predicated region
      $region9: #{tpu_custom_call.1} parent=5 // pred_check
        _
      $region10: #{tpu_custom_call.1} parent=5 // pred_check_branch
        %129 = sbr.rel (%p126) target = $region12
      $region11: #{tpu_custom_call.1} parent=5 // pred_region
        %s130 = ssub.s32 %s12, 1
      $region12: #{tpu_custom_call.1} parent=5 // pred_fallthru
        _
      %p131 = scmp.lt.s32.totalorder %s12, 2
      // Predicated region
      $region13: #{tpu_custom_call.1} parent=5 // pred_check
        %p132 = pneg %p131
      $region14: #{tpu_custom_call.1} parent=5 // pred_check_branch
        %134 = sbr.rel (%p132) target = $region16
      $region15: #{tpu_custom_call.1} parent=5 // pred_region
        // Predicated region
        $region17: #{tpu_custom_call.1} parent=15 // pred_check
          %p135 = pneg %p32
        $region18: #{tpu_custom_call.1} parent=15 // pred_check_branch
          %137 = sbr.rel (%p135) target = $region20
        $region19: #{tpu_custom_call.1} parent=15 // pred_region
          %s138 = smul.u32 8, %s12
          %p139 = scmp.lt.s32.totalorder %s138, 15
          %s140 = scalar_select %p139, %s138, 15
          %s141 = smul.addr %s140, 2
          %s142 = smul.addr %s141, 8
          %s143 = scalar_lea.vmem %s0, %s142
          %s144 = smul.u32 8, %s12
        $region20: #{tpu_custom_call.1} parent=15 // pred_fallthru
          _
        // Predicated region
        $region21: #{tpu_custom_call.1} parent=15 // pred_check
          %p145 = pneg %p58
        $region22: #{tpu_custom_call.1} parent=15 // pred_check_branch
          %147 = sbr.rel (%p145) target = $region24
        $region23: #{tpu_custom_call.1} parent=15 // pred_region
          %s148 = smul.u32 8, %s12
          %p149 = scmp.lt.s32.totalorder %s148, 15
          %s150 = scalar_select %p149, %s148, 15
          %s151 = smul.addr %s150, 2
          %s152 = smul.addr %s151, 8
          %s153 = scalar_lea.vmem %s1, %s152
          %s154 = smul.u32 8, %s12
        $region24: #{tpu_custom_call.1} parent=15 // pred_fallthru
          _
        // Predicated region
        $region25: #{tpu_custom_call.1} parent=15 // pred_check
          %p155 = pneg %p84
        $region26: #{tpu_custom_call.1} parent=15 // pred_check_branch
          %157 = sbr.rel (%p155) target = $region28
        $region27: #{tpu_custom_call.1} parent=15 // pred_region
          %s158 = smul.u32 8, %s12
          %p159 = scmp.lt.s32.totalorder %s158, 15
          %s160 = scalar_select %p159, %s158, 15
          %s161 = smul.addr %s160, 8
          %s162 = smul.addr %s161, 8
          %s163 = scalar_lea.vmem %s2, %s162
          %s164 = smul.u32 8, %s12
        $region28: #{tpu_custom_call.1} parent=15 // pred_fallthru
          _
      $region16: #{tpu_custom_call.1} parent=5 // pred_fallthru
        _
      %p165 = scmp.le.s32.totalorder 1, %s12
      %p166 = scmp.lt.s32.totalorder %s12, 3
      %p167 = pnand %p165, %p166
      %p168 = pneg %p167
      // Predicated region
      $region29: #{tpu_custom_call.1} parent=5 // pred_check
        _
      $region30: #{tpu_custom_call.1} parent=5 // pred_check_branch
        %170 = sbr.rel (%p167) target = $region32
      $region31: #{tpu_custom_call.1} parent=5 // pred_region
        %s171 = ssub.s32 %s12, 1
        %s172 = smul.u32 8, %s17
        %p173 = scmp.lt.s32.totalorder %s172, 15
        %s174 = scalar_select %p173, %s172, 15
        %s175 = smul.addr %s174, 2
        %s176 = smul.addr %s175, 8
        %s177 = scalar_lea.vmem %s0, %s176
        %p178 = pneg %p38
        %p179 = pneg %p35
        %s180 = smul.u32 8, %s17
        %p181 = scmp.lt.s32.totalorder %s180, 15
        %s182 = scalar_select %p181, %s180, 15
        %s183 = smul.addr %s182, 2
        %s184 = smul.addr %s183, 8
        %s185 = scalar_lea.vmem %s1, %s184
        %p186 = pneg %p64
        %p187 = pneg %p61
        %s188 = smul.u32 8, %s17
        %p189 = scmp.lt.s32.totalorder %s188, 15
        %s190 = scalar_select %p189, %s188, 15
        %s191 = smul.addr %s190, 8
        %s192 = smul.addr %s191, 8
        %s193 = scalar_lea.vmem %s2, %s192
        %p194 = pneg %p90
        %p195 = pneg %p87
        %p196 = pneg %p116
        %p197 = pneg %p113
        %s198 = sand.u32 %s103, 1
        %s199 = scalar_lea.sflag [#allocation3], %s198
        %s200 = sand.u32 %s103, 1
        %s201 = smul.addr %s200, 16
        %s202 = scalar_lea.vmem [#allocation2], %s201
        %s203 = smul.u32 8, %s17
        %p204 = scmp.lt.s32.totalorder %s203, 15
        %s205 = scalar_select %p204, %s203, 15
        %s206 = smul.addr %s205, 2
        %s207 = smul.addr %s206, 8
        %s208 = scalar_lea.vmem %s0, %s207
        %s209 = smul.u32 8, %s17
        %s210 = smul.u32 8, %s17
        %p211 = scmp.lt.s32.totalorder %s210, 15
        %s212 = scalar_select %p211, %s210, 15
        %s213 = smul.addr %s212, 2
        %s214 = smul.addr %s213, 8
        %s215 = scalar_lea.vmem %s1, %s214
        %s216 = smul.u32 8, %s17
        %s217 = smul.u32 8, %s17
        %p218 = scmp.lt.s32.totalorder %s217, 15
        %s219 = scalar_select %p218, %s217, 15
        %s220 = smul.addr %s219, 8
        %s221 = smul.addr %s220, 8
        %s222 = scalar_lea.vmem %s2, %s221
        %s223 = smul.u32 8, %s17
        %s224 = smul.u32 8, %s17
        %v225 = vld [vmem:[%s208] sm:$0xff]
        %v226 = vld [vmem:[%s208 + $0x8] sm:$0xff]
        %v227 = vld [vmem:[%s208 + $0x10] sm:$0xff]
        %v228 = vld [vmem:[%s208 + $0x18] sm:$0xff]
        %v229 = vld [vmem:[%s208 + $0x20] sm:$0xff]
        %v230 = vld [vmem:[%s208 + $0x28] sm:$0xff]
        %v231 = vld [vmem:[%s208 + $0x30] sm:$0xff]
        %v232 = vld [vmem:[%s208 + $0x38] sm:$0xff]
        %v233 = vld [vmem:[%s208 + $0x40] sm:$0xff]
        %v234 = vld [vmem:[%s208 + $0x48] sm:$0xff]
        %v235 = vld [vmem:[%s208 + $0x50] sm:$0xff]
        %v236 = vld [vmem:[%s208 + $0x58] sm:$0xff]
        %v237 = vld [vmem:[%s208 + $0x60] sm:$0xff]
        %v238 = vld [vmem:[%s208 + $0x68] sm:$0xff]
        %v239 = vld [vmem:[%s208 + $0x70] sm:$0xff]
        %v240 = vld [vmem:[%s208 + $0x78] sm:$0xff]
        %v241 = vld [vmem:[%s215] sm:$0xff]
        %v242 = vld [vmem:[%s215 + $0x8] sm:$0xff]
        %v243 = vld [vmem:[%s215 + $0x10] sm:$0xff]
        %v244 = vld [vmem:[%s215 + $0x18] sm:$0xff]
        %v245 = vld [vmem:[%s215 + $0x20] sm:$0xff]
        %v246 = vld [vmem:[%s215 + $0x28] sm:$0xff]
        %v247 = vld [vmem:[%s215 + $0x30] sm:$0xff]
        %v248 = vld [vmem:[%s215 + $0x38] sm:$0xff]
        %v249 = vld [vmem:[%s215 + $0x40] sm:$0xff]
        %v250 = vld [vmem:[%s215 + $0x48] sm:$0xff]
        %v251 = vld [vmem:[%s215 + $0x50] sm:$0xff]
        %v252 = vld [vmem:[%s215 + $0x58] sm:$0xff]
        %v253 = vld [vmem:[%s215 + $0x60] sm:$0xff]
        %v254 = vld [vmem:[%s215 + $0x68] sm:$0xff]
        %v255 = vld [vmem:[%s215 + $0x70] sm:$0xff]
        %v256 = vld [vmem:[%s215 + $0x78] sm:$0xff]
        %v257 = vld [vmem:[%s222] sm:$0xff]
        %v258 = vld [vmem:[%s222 + $0x8] sm:$0xff]
        %v259 = vld [vmem:[%s222 + $0x10] sm:$0xff]
        %v260 = vld [vmem:[%s222 + $0x18] sm:$0xff]
        %v261 = vld [vmem:[%s222 + $0x20] sm:$0xff]
        %v262 = vld [vmem:[%s222 + $0x28] sm:$0xff]
        %v263 = vld [vmem:[%s222 + $0x30] sm:$0xff]
        %v264 = vld [vmem:[%s222 + $0x38] sm:$0xff]
        %v265 = vld [vmem:[%s222 + $0x40] sm:$0xff]
        %v266 = vld [vmem:[%s222 + $0x48] sm:$0xff]
        %v267 = vld [vmem:[%s222 + $0x50] sm:$0xff]
        %v268 = vld [vmem:[%s222 + $0x58] sm:$0xff]
        %v269 = vld [vmem:[%s222 + $0x60] sm:$0xff]
        %v270 = vld [vmem:[%s222 + $0x68] sm:$0xff]
        %v271 = vld [vmem:[%s222 + $0x70] sm:$0xff]
        %v272 = vld [vmem:[%s222 + $0x78] sm:$0xff]
        %v273 = vld [vmem:[%s222 + $0x80] sm:$0xff]
        %v274 = vld [vmem:[%s222 + $0x88] sm:$0xff]
        %v275 = vld [vmem:[%s222 + $0x90] sm:$0xff]
        %v276 = vld [vmem:[%s222 + $0x98] sm:$0xff]
        %v277 = vld [vmem:[%s222 + $0xa0] sm:$0xff]
        %v278 = vld [vmem:[%s222 + $0xa8] sm:$0xff]
        %v279 = vld [vmem:[%s222 + $0xb0] sm:$0xff]
        %v280 = vld [vmem:[%s222 + $0xb8] sm:$0xff]
        %v281 = vld [vmem:[%s222 + $0xc0] sm:$0xff]
        %v282 = vld [vmem:[%s222 + $0xc8] sm:$0xff]
        %v283 = vld [vmem:[%s222 + $0xd0] sm:$0xff]
        %v284 = vld [vmem:[%s222 + $0xd8] sm:$0xff]
        %v285 = vld [vmem:[%s222 + $0xe0] sm:$0xff]
        %v286 = vld [vmem:[%s222 + $0xe8] sm:$0xff]
        %v287 = vld [vmem:[%s222 + $0xf0] sm:$0xff]
        %v288 = vld [vmem:[%s222 + $0xf8] sm:$0xff]
        %v289 = vld [vmem:[%s222 + $0x100] sm:$0xff]
        %v290 = vld [vmem:[%s222 + $0x108] sm:$0xff]
        %v291 = vld [vmem:[%s222 + $0x110] sm:$0xff]
        %v292 = vld [vmem:[%s222 + $0x118] sm:$0xff]
        %v293 = vld [vmem:[%s222 + $0x120] sm:$0xff]
        %v294 = vld [vmem:[%s222 + $0x128] sm:$0xff]
        %v295 = vld [vmem:[%s222 + $0x130] sm:$0xff]
        %v296 = vld [vmem:[%s222 + $0x138] sm:$0xff]
        %v297 = vld [vmem:[%s222 + $0x140] sm:$0xff]
        %v298 = vld [vmem:[%s222 + $0x148] sm:$0xff]
        %v299 = vld [vmem:[%s222 + $0x150] sm:$0xff]
        %v300 = vld [vmem:[%s222 + $0x158] sm:$0xff]
        %v301 = vld [vmem:[%s222 + $0x160] sm:$0xff]
        %v302 = vld [vmem:[%s222 + $0x168] sm:$0xff]
        %v303 = vld [vmem:[%s222 + $0x170] sm:$0xff]
        %v304 = vld [vmem:[%s222 + $0x178] sm:$0xff]
        %v305 = vld [vmem:[%s222 + $0x180] sm:$0xff]
        %v306 = vld [vmem:[%s222 + $0x188] sm:$0xff]
        %v307 = vld [vmem:[%s222 + $0x190] sm:$0xff]
        %v308 = vld [vmem:[%s222 + $0x198] sm:$0xff]
        %v309 = vld [vmem:[%s222 + $0x1a0] sm:$0xff]
        %v310 = vld [vmem:[%s222 + $0x1a8] sm:$0xff]
        %v311 = vld [vmem:[%s222 + $0x1b0] sm:$0xff]
        %v312 = vld [vmem:[%s222 + $0x1b8] sm:$0xff]
        %v313 = vld [vmem:[%s222 + $0x1c0] sm:$0xff]
        %v314 = vld [vmem:[%s222 + $0x1c8] sm:$0xff]
        %v315 = vld [vmem:[%s222 + $0x1d0] sm:$0xff]
        %v316 = vld [vmem:[%s222 + $0x1d8] sm:$0xff]
        %v317 = vld [vmem:[%s222 + $0x1e0] sm:$0xff]
        %v318 = vld [vmem:[%s222 + $0x1e8] sm:$0xff]
        %v319 = vld [vmem:[%s222 + $0x1f0] sm:$0xff]
        %v320 = vld [vmem:[%s222 + $0x1f8] sm:$0xff]
        %v321 = vlaneseq
        %v322 = vshrl.u32 %v321, 7
        %v323 = vadd.s32 %v322, 8
        %v324 = vand.u32 %v322, 7
        %v325 = vand.u32 %v323, 7
        %v326 = vrot.slane %v225, 6
        %v327 = vrot.slane %v227, 6
        %v328 = vrot.slane %v229, 6
        %v329 = vrot.slane %v231, 6
        %v330 = vrot.slane %v233, 6
        %v331 = vrot.slane %v235, 6
        %v332 = vrot.slane %v237, 6
        %v333 = vrot.slane %v239, 6
        %v334 = vrot.slane %v226, 6
        %v335 = vrot.slane %v228, 6
        %v336 = vrot.slane %v230, 6
        %v337 = vrot.slane %v232, 6
        %v338 = vrot.slane %v234, 6
        %v339 = vrot.slane %v236, 6
        %v340 = vrot.slane %v238, 6
        %v341 = vrot.slane %v240, 6
        %vm342 = vcmp.lt.s32.totalorder %v322, 2
        %v343 = vsel %vm342, %v326, %v334
        %v344 = vsel %vm342, %v327, %v335
        %v345 = vsel %vm342, %v328, %v336
        %v346 = vsel %vm342, %v329, %v337
        %v347 = vsel %vm342, %v330, %v338
        %v348 = vsel %vm342, %v331, %v339
        %v349 = vsel %vm342, %v332, %v340
        %v350 = vsel %vm342, %v333, %v341
        %v351 = vsel %vm342, %v334, %v326
        %v352 = vsel %vm342, %v335, %v327
        %v353 = vsel %vm342, %v336, %v328
        %v354 = vsel %vm342, %v337, %v329
        %v355 = vsel %vm342, %v338, %v330
        %v356 = vsel %vm342, %v339, %v331
        %v357 = vsel %vm342, %v340, %v332
        %v358 = vsel %vm342, %v341, %v333
        %v359 = vadd.s32 %v324, 4294967294
        %v360 = vadd.s32 %v325, 4294967294
        %vm361 = vcmp.ge.s32.totalorder %v359, 0
        %vm362 = vcmp.ge.s32.totalorder %v360, 0
        %vm363 = vcmp.lt.s32.totalorder %v359, 8
        %vm364 = vcmp.lt.s32.totalorder %v360, 8
        %vm365 = vmand %vm361, %vm363
        %vm366 = vmand %vm362, %vm364
        %v367 = vsel %vm365, %v351, 0.0
        %v368 = vsel %vm366, %v343, 0.0
        %v369 = vsel %vm365, %v352, 0.0
        %v370 = vsel %vm366, %v344, 0.0
        %v371 = vsel %vm365, %v353, 0.0
        %v372 = vsel %vm366, %v345, 0.0
        %v373 = vsel %vm365, %v354, 0.0
        %v374 = vsel %vm366, %v346, 0.0
        %v375 = vsel %vm365, %v355, 0.0
        %v376 = vsel %vm366, %v347, 0.0
        %v377 = vsel %vm365, %v356, 0.0
        %v378 = vsel %vm366, %v348, 0.0
        %v379 = vsel %vm365, %v357, 0.0
        %v380 = vsel %vm366, %v349, 0.0
        %v381 = vsel %vm365, %v358, 0.0
        %v382 = vsel %vm366, %v350, 0.0
        %v383 = vsel %vm365, %v351, -inf
        %v384 = vsel %vm366, %v343, -inf
        %v385 = vsel %vm365, %v352, -inf
        %v386 = vsel %vm366, %v344, -inf
        %v387 = vsel %vm365, %v353, -inf
        %v388 = vsel %vm366, %v345, -inf
        %v389 = vsel %vm365, %v354, -inf
        %v390 = vsel %vm366, %v346, -inf
        %v391 = vsel %vm365, %v355, -inf
        %v392 = vsel %vm366, %v347, -inf
        %v393 = vsel %vm365, %v356, -inf
        %v394 = vsel %vm366, %v348, -inf
        %v395 = vsel %vm365, %v357, -inf
        %v396 = vsel %vm366, %v349, -inf
        %v397 = vsel %vm365, %v358, -inf
        %v398 = vsel %vm366, %v350, -inf
        %v399 = vrot.slane %v225, 7
        %v400 = vrot.slane %v227, 7
        %v401 = vrot.slane %v229, 7
        %v402 = vrot.slane %v231, 7
        %v403 = vrot.slane %v233, 7
        %v404 = vrot.slane %v235, 7
        %v405 = vrot.slane %v237, 7
        %v406 = vrot.slane %v239, 7
        %v407 = vrot.slane %v226, 7
        %v408 = vrot.slane %v228, 7
        %v409 = vrot.slane %v230, 7
        %v410 = vrot.slane %v232, 7
        %v411 = vrot.slane %v234, 7
        %v412 = vrot.slane %v236, 7
        %v413 = vrot.slane %v238, 7
        %v414 = vrot.slane %v240, 7
        %vm415 = vcmp.lt.s32.totalorder %v322, 1
        %v416 = vsel %vm415, %v399, %v407
        %v417 = vsel %vm415, %v400, %v408
        %v418 = vsel %vm415, %v401, %v409
        %v419 = vsel %vm415, %v402, %v410
        %v420 = vsel %vm415, %v403, %v411
        %v421 = vsel %vm415, %v404, %v412
        %v422 = vsel %vm415, %v405, %v413
        %v423 = vsel %vm415, %v406, %v414
        %v424 = vsel %vm415, %v407, %v399
        %v425 = vsel %vm415, %v408, %v400
        %v426 = vsel %vm415, %v409, %v401
        %v427 = vsel %vm415, %v410, %v402
        %v428 = vsel %vm415, %v411, %v403
        %v429 = vsel %vm415, %v412, %v404
        %v430 = vsel %vm415, %v413, %v405
        %v431 = vsel %vm415, %v414, %v406
        %v432 = vadd.s32 %v324, 4294967295
        %v433 = vadd.s32 %v325, 4294967295
        %vm434 = vcmp.ge.s32.totalorder %v432, 0
        %vm435 = vcmp.ge.s32.totalorder %v433, 0
        %vm436 = vcmp.lt.s32.totalorder %v432, 8
        %vm437 = vcmp.lt.s32.totalorder %v433, 8
        %vm438 = vmand %vm434, %vm436
        %vm439 = vmand %vm435, %vm437
        %v440 = vsel %vm438, %v424, 0.0
        %v441 = vsel %vm439, %v416, 0.0
        %v442 = vsel %vm438, %v425, 0.0
        %v443 = vsel %vm439, %v417, 0.0
        %v444 = vsel %vm438, %v426, 0.0
        %v445 = vsel %vm439, %v418, 0.0
        %v446 = vsel %vm438, %v427, 0.0
        %v447 = vsel %vm439, %v419, 0.0
        %v448 = vsel %vm438, %v428, 0.0
        %v449 = vsel %vm439, %v420, 0.0
        %v450 = vsel %vm438, %v429, 0.0
        %v451 = vsel %vm439, %v421, 0.0
        %v452 = vsel %vm438, %v430, 0.0
        %v453 = vsel %vm439, %v422, 0.0
        %v454 = vsel %vm438, %v431, 0.0
        %v455 = vsel %vm439, %v423, 0.0
        %v456 = vsel %vm438, %v424, -inf
        %v457 = vsel %vm439, %v416, -inf
        %v458 = vsel %vm438, %v425, -inf
        %v459 = vsel %vm439, %v417, -inf
        %v460 = vsel %vm438, %v426, -inf
        %v461 = vsel %vm439, %v418, -inf
        %v462 = vsel %vm438, %v427, -inf
        %v463 = vsel %vm439, %v419, -inf
        %v464 = vsel %vm438, %v428, -inf
        %v465 = vsel %vm439, %v420, -inf
        %v466 = vsel %vm438, %v429, -inf
        %v467 = vsel %vm439, %v421, -inf
        %v468 = vsel %vm438, %v430, -inf
        %v469 = vsel %vm439, %v422, -inf
        %v470 = vsel %vm438, %v431, -inf
        %v471 = vsel %vm439, %v423, -inf
        %v472 = vrot.slane %v225, 1
        %v473 = vrot.slane %v227, 1
        %v474 = vrot.slane %v229, 1
        %v475 = vrot.slane %v231, 1
        %v476 = vrot.slane %v233, 1
        %v477 = vrot.slane %v235, 1
        %v478 = vrot.slane %v237, 1
        %v479 = vrot.slane %v239, 1
        %v480 = vrot.slane %v226, 1
        %v481 = vrot.slane %v228, 1
        %v482 = vrot.slane %v230, 1
        %v483 = vrot.slane %v232, 1
        %v484 = vrot.slane %v234, 1
        %v485 = vrot.slane %v236, 1
        %v486 = vrot.slane %v238, 1
        %v487 = vrot.slane %v240, 1
        %vm488 = vcmp.lt.s32.totalorder %v322, 7
        %v489 = vsel %vm488, %v472, %v480
        %v490 = vsel %vm488, %v473, %v481
        %v491 = vsel %vm488, %v474, %v482
        %v492 = vsel %vm488, %v475, %v483
        %v493 = vsel %vm488, %v476, %v484
        %v494 = vsel %vm488, %v477, %v485
        %v495 = vsel %vm488, %v478, %v486
        %v496 = vsel %vm488, %v479, %v487
        %v497 = vsel %vm488, %v480, %v472
        %v498 = vsel %vm488, %v481, %v473
        %v499 = vsel %vm488, %v482, %v474
        %v500 = vsel %vm488, %v483, %v475
        %v501 = vsel %vm488, %v484, %v476
        %v502 = vsel %vm488, %v485, %v477
        %v503 = vsel %vm488, %v486, %v478
        %v504 = vsel %vm488, %v487, %v479
        %v505 = vadd.s32 %v324, 1
        %v506 = vadd.s32 %v325, 1
        %vm507 = vcmp.ge.s32.totalorder %v505, 0
        %vm508 = vcmp.ge.s32.totalorder %v506, 0
        %vm509 = vcmp.lt.s32.totalorder %v505, 8
        %vm510 = vcmp.lt.s32.totalorder %v506, 8
        %vm511 = vmand %vm507, %vm509
        %vm512 = vmand %vm508, %vm510
        %v513 = vsel %vm511, %v489, 0.0
        %v514 = vsel %vm512, %v497, 0.0
        %v515 = vsel %vm511, %v490, 0.0
        %v516 = vsel %vm512, %v498, 0.0
        %v517 = vsel %vm511, %v491, 0.0
        %v518 = vsel %vm512, %v499, 0.0
        %v519 = vsel %vm511, %v492, 0.0
        %v520 = vsel %vm512, %v500, 0.0
        %v521 = vsel %vm511, %v493, 0.0
        %v522 = vsel %vm512, %v501, 0.0
        %v523 = vsel %vm511, %v494, 0.0
        %v524 = vsel %vm512, %v502, 0.0
        %v525 = vsel %vm511, %v495, 0.0
        %v526 = vsel %vm512, %v503, 0.0
        %v527 = vsel %vm511, %v496, 0.0
        %v528 = vsel %vm512, %v504, 0.0
        %v529 = vsel %vm511, %v489, -inf
        %v530 = vsel %vm512, %v497, -inf
        %v531 = vsel %vm511, %v490, -inf
        %v532 = vsel %vm512, %v498, -inf
        %v533 = vsel %vm511, %v491, -inf
        %v534 = vsel %vm512, %v499, -inf
        %v535 = vsel %vm511, %v492, -inf
        %v536 = vsel %vm512, %v500, -inf
        %v537 = vsel %vm511, %v493, -inf
        %v538 = vsel %vm512, %v501, -inf
        %v539 = vsel %vm511, %v494, -inf
        %v540 = vsel %vm512, %v502, -inf
        %v541 = vsel %vm511, %v495, -inf
        %v542 = vsel %vm512, %v503, -inf
        %v543 = vsel %vm511, %v496, -inf
        %v544 = vsel %vm512, %v504, -inf
        %v545 = vrot.slane %v225, 2
        %v546 = vrot.slane %v227, 2
        %v547 = vrot.slane %v229, 2
        %v548 = vrot.slane %v231, 2
        %v549 = vrot.slane %v233, 2
        %v550 = vrot.slane %v235, 2
        %v551 = vrot.slane %v237, 2
        %v552 = vrot.slane %v239, 2
        %v553 = vrot.slane %v226, 2
        %v554 = vrot.slane %v228, 2
        %v555 = vrot.slane %v230, 2
        %v556 = vrot.slane %v232, 2
        %v557 = vrot.slane %v234, 2
        %v558 = vrot.slane %v236, 2
        %v559 = vrot.slane %v238, 2
        %v560 = vrot.slane %v240, 2
        %vm561 = vcmp.lt.s32.totalorder %v322, 6
        %v562 = vsel %vm561, %v545, %v553
        %v563 = vsel %vm561, %v546, %v554
        %v564 = vsel %vm561, %v547, %v555
        %v565 = vsel %vm561, %v548, %v556
        %v566 = vsel %vm561, %v549, %v557
        %v567 = vsel %vm561, %v550, %v558
        %v568 = vsel %vm561, %v551, %v559
        %v569 = vsel %vm561, %v552, %v560
        %v570 = vsel %vm561, %v553, %v545
        %v571 = vsel %vm561, %v554, %v546
        %v572 = vsel %vm561, %v555, %v547
        %v573 = vsel %vm561, %v556, %v548
        %v574 = vsel %vm561, %v557, %v549
        %v575 = vsel %vm561, %v558, %v550
        %v576 = vsel %vm561, %v559, %v551
        %v577 = vsel %vm561, %v560, %v552
        %v578 = vadd.s32 %v324, 2
        %v579 = vadd.s32 %v325, 2
        %vm580 = vcmp.ge.s32.totalorder %v578, 0
        %vm581 = vcmp.ge.s32.totalorder %v579, 0
        %vm582 = vcmp.lt.s32.totalorder %v578, 8
        %vm583 = vcmp.lt.s32.totalorder %v579, 8
        %vm584 = vmand %vm580, %vm582
        %vm585 = vmand %vm581, %vm583
        %v586 = vsel %vm584, %v562, 0.0
        %v587 = vsel %vm585, %v570, 0.0
        %v588 = vsel %vm584, %v563, 0.0
        %v589 = vsel %vm585, %v571, 0.0
        %v590 = vsel %vm584, %v564, 0.0
        %v591 = vsel %vm585, %v572, 0.0
        %v592 = vsel %vm584, %v565, 0.0
        %v593 = vsel %vm585, %v573, 0.0
        %v594 = vsel %vm584, %v566, 0.0
        %v595 = vsel %vm585, %v574, 0.0
        %v596 = vsel %vm584, %v567, 0.0
        %v597 = vsel %vm585, %v575, 0.0
        %v598 = vsel %vm584, %v568, 0.0
        %v599 = vsel %vm585, %v576, 0.0
        %v600 = vsel %vm584, %v569, 0.0
        %v601 = vsel %vm585, %v577, 0.0
        %v602 = vsel %vm584, %v562, -inf
        %v603 = vsel %vm585, %v570, -inf
        %v604 = vsel %vm584, %v563, -inf
        %v605 = vsel %vm585, %v571, -inf
        %v606 = vsel %vm584, %v564, -inf
        %v607 = vsel %vm585, %v572, -inf
        %v608 = vsel %vm584, %v565, -inf
        %v609 = vsel %vm585, %v573, -inf
        %v610 = vsel %vm584, %v566, -inf
        %v611 = vsel %vm585, %v574, -inf
        %v612 = vsel %vm584, %v567, -inf
        %v613 = vsel %vm585, %v575, -inf
        %v614 = vsel %vm584, %v568, -inf
        %v615 = vsel %vm585, %v576, -inf
        %v616 = vsel %vm584, %v569, -inf
        %v617 = vsel %vm585, %v577, -inf
        %634 = vrot.lane.b32.xlu0 %v225, 32
        %v635 = vpop.permute.xlu0 %634
        %636 = vrot.lane.b32.xlu0 %v226, 32
        %v637 = vpop.permute.xlu0 %636
        %638 = vrot.lane.b32.xlu0 %v227, 32
        %v639 = vpop.permute.xlu0 %638
        %640 = vrot.lane.b32.xlu0 %v228, 32
        %v641 = vpop.permute.xlu0 %640
        %642 = vrot.lane.b32.xlu0 %v229, 32
        %v643 = vpop.permute.xlu0 %642
        %644 = vrot.lane.b32.xlu0 %v230, 32
        %v645 = vpop.permute.xlu0 %644
        %646 = vrot.lane.b32.xlu0 %v231, 32
        %v647 = vpop.permute.xlu0 %646
        %648 = vrot.lane.b32.xlu0 %v232, 32
        %v649 = vpop.permute.xlu0 %648
        %650 = vrot.lane.b32.xlu0 %v233, 32
        %v651 = vpop.permute.xlu0 %650
        %652 = vrot.lane.b32.xlu0 %v234, 32
        %v653 = vpop.permute.xlu0 %652
        %654 = vrot.lane.b32.xlu0 %v235, 32
        %v655 = vpop.permute.xlu0 %654
        %656 = vrot.lane.b32.xlu0 %v236, 32
        %v657 = vpop.permute.xlu0 %656
        %658 = vrot.lane.b32.xlu0 %v237, 32
        %v659 = vpop.permute.xlu0 %658
        %660 = vrot.lane.b32.xlu0 %v238, 32
        %v661 = vpop.permute.xlu0 %660
        %662 = vrot.lane.b32.xlu0 %v239, 32
        %v663 = vpop.permute.xlu0 %662
        %664 = vrot.lane.b32.xlu0 %v240, 32
        %v665 = vpop.permute.xlu0 %664
        %698 = vrot.lane.b32.xlu0 %v513, 64
        %v699 = vpop.permute.xlu0 %698
        %700 = vrot.lane.b32.xlu0 %v514, 64
        %v701 = vpop.permute.xlu0 %700
        %702 = vrot.lane.b32.xlu0 %v515, 64
        %v703 = vpop.permute.xlu0 %702
        %704 = vrot.lane.b32.xlu0 %v516, 64
        %v705 = vpop.permute.xlu0 %704
        %706 = vrot.lane.b32.xlu0 %v517, 64
        %v707 = vpop.permute.xlu0 %706
        %708 = vrot.lane.b32.xlu0 %v518, 64
        %v709 = vpop.permute.xlu0 %708
        %710 = vrot.lane.b32.xlu0 %v519, 64
        %v711 = vpop.permute.xlu0 %710
        %712 = vrot.lane.b32.xlu0 %v520, 64
        %v713 = vpop.permute.xlu0 %712
        %714 = vrot.lane.b32.xlu0 %v521, 64
        %v715 = vpop.permute.xlu0 %714
        %716 = vrot.lane.b32.xlu0 %v522, 64
        %v717 = vpop.permute.xlu0 %716
        %718 = vrot.lane.b32.xlu0 %v523, 64
        %v719 = vpop.permute.xlu0 %718
        %720 = vrot.lane.b32.xlu0 %v524, 64
        %v721 = vpop.permute.xlu0 %720
        %722 = vrot.lane.b32.xlu0 %v525, 64
        %v723 = vpop.permute.xlu0 %722
        %724 = vrot.lane.b32.xlu0 %v526, 64
        %v725 = vpop.permute.xlu0 %724
        %726 = vrot.lane.b32.xlu0 %v527, 64
        %v727 = vpop.permute.xlu0 %726
        %728 = vrot.lane.b32.xlu0 %v528, 64
        %v729 = vpop.permute.xlu0 %728
        %vm746 = vcmask 261120
        %v747 = vsel %vm746, %v440, %v635
        %v748 = vsel %vm746, %v441, %v637
        %v749 = vsel %vm746, %v442, %v639
        %v750 = vsel %vm746, %v443, %v641
        %v751 = vsel %vm746, %v444, %v643
        %v752 = vsel %vm746, %v445, %v645
        %v753 = vsel %vm746, %v446, %v647
        %v754 = vsel %vm746, %v447, %v649
        %v755 = vsel %vm746, %v448, %v651
        %v756 = vsel %vm746, %v449, %v653
        %v757 = vsel %vm746, %v450, %v655
        %v758 = vsel %vm746, %v451, %v657
        %v759 = vsel %vm746, %v452, %v659
        %v760 = vsel %vm746, %v453, %v661
        %v761 = vsel %vm746, %v454, %v663
        %v762 = vsel %vm746, %v455, %v665
        %vm763 = vcmask 523264
        %v764 = vsel %vm763, %v747, %v699
        %v765 = vsel %vm763, %v748, %v701
        %v766 = vsel %vm763, %v749, %v703
        %v767 = vsel %vm763, %v750, %v705
        %v768 = vsel %vm763, %v751, %v707
        %v769 = vsel %vm763, %v752, %v709
        %v770 = vsel %vm763, %v753, %v711
        %v771 = vsel %vm763, %v754, %v713
        %v772 = vsel %vm763, %v755, %v715
        %v773 = vsel %vm763, %v756, %v717
        %v774 = vsel %vm763, %v757, %v719
        %v775 = vsel %vm763, %v758, %v721
        %v776 = vsel %vm763, %v759, %v723
        %v777 = vsel %vm763, %v760, %v725
        %v778 = vsel %vm763, %v761, %v727
        %v779 = vsel %vm763, %v762, %v729
        %vm780 = vcmask 785408
        %v782 = vsel %vm780, %v764, 0
        %v785 = vsel %vm780, %v765, 0
        %v788 = vsel %vm780, %v241, 0
        %v791 = vsel %vm780, %v242, 0
        %793 = vmatpush.xpose.msra.mxu0 0.0
        %794 = vmatpush.xpose.msra.mxu0 0.0
        %795 = vmatpush.xpose.msra.mxu0 0.0
        %796 = vmatpush.xpose.msra.mxu0 0.0
        %797 = vmatpush.xpose.msra.mxu0 0.0
        %798 = vmatpush.xpose.msra.mxu0 0.0
        %799 = vmatpush.xpose.msra.mxu0 0.0
        %800 = vmatpush.xpose.msra.mxu0 0.0
        %801 = vmatpush.xpose.msra.mxu0 0.0
        %802 = vmatpush.xpose.msra.mxu0 0.0
        %803 = vmatpush.xpose.msra.mxu0 0.0
        %804 = vmatpush.xpose.msra.mxu0 0.0
        %805 = vmatpush.xpose.msra.mxu0 0.0
        %806 = vmatpush.xpose.msra.mxu0 0.0
        %807 = vmatpush.xpose.msra.mxu0 %v791
        %808 = vmatpush.xpose.msra.mxu0 %v788
        %809 = vmatmul.f32.gmra.mxu0 %v782
        %v810 = vpop.f32.mrf.mxu0
        %v811 = vadd.f32 0.0, %v810
        %812 = vmatmul.f32.gmra.mxu0 %v785
        %v813 = vpop.f32.mrf.mxu0
        %v814 = vadd.f32 0.0, %v813
        %815 = vdwg.mxu0
        %v817 = vsel %vm780, %v766, 0
        %v820 = vsel %vm780, %v767, 0
        %v823 = vsel %vm780, %v243, 0
        %v826 = vsel %vm780, %v244, 0
        %828 = vmatpush.xpose.msra.mxu0 0.0
        %829 = vmatpush.xpose.msra.mxu0 0.0
        %830 = vmatpush.xpose.msra.mxu0 0.0
        %831 = vmatpush.xpose.msra.mxu0 0.0
        %832 = vmatpush.xpose.msra.mxu0 0.0
        %833 = vmatpush.xpose.msra.mxu0 0.0
        %834 = vmatpush.xpose.msra.mxu0 0.0
        %835 = vmatpush.xpose.msra.mxu0 0.0
        %836 = vmatpush.xpose.msra.mxu0 0.0
        %837 = vmatpush.xpose.msra.mxu0 0.0
        %838 = vmatpush.xpose.msra.mxu0 0.0
        %839 = vmatpush.xpose.msra.mxu0 0.0
        %840 = vmatpush.xpose.msra.mxu0 0.0
        %841 = vmatpush.xpose.msra.mxu0 0.0
        %842 = vmatpush.xpose.msra.mxu0 %v826
        %843 = vmatpush.xpose.msra.mxu0 %v823
        %844 = vmatmul.f32.gmra.mxu0 %v817
        %v845 = vpop.f32.mrf.mxu0
        %v846 = vadd.f32 0.0, %v845
        %847 = vmatmul.f32.gmra.mxu0 %v820
        %v848 = vpop.f32.mrf.mxu0
        %v849 = vadd.f32 0.0, %v848
        %850 = vdwg.mxu0
        %v852 = vsel %vm780, %v768, 0
        %v855 = vsel %vm780, %v769, 0
        %v858 = vsel %vm780, %v245, 0
        %v861 = vsel %vm780, %v246, 0
        %863 = vmatpush.xpose.msra.mxu0 0.0
        %864 = vmatpush.xpose.msra.mxu0 0.0
        %865 = vmatpush.xpose.msra.mxu0 0.0
        %866 = vmatpush.xpose.msra.mxu0 0.0
        %867 = vmatpush.xpose.msra.mxu0 0.0
        %868 = vmatpush.xpose.msra.mxu0 0.0
        %869 = vmatpush.xpose.msra.mxu0 0.0
        %870 = vmatpush.xpose.msra.mxu0 0.0
        %871 = vmatpush.xpose.msra.mxu0 0.0
        %872 = vmatpush.xpose.msra.mxu0 0.0
        %873 = vmatpush.xpose.msra.mxu0 0.0
        %874 = vmatpush.xpose.msra.mxu0 0.0
        %875 = vmatpush.xpose.msra.mxu0 0.0
        %876 = vmatpush.xpose.msra.mxu0 0.0
        %877 = vmatpush.xpose.msra.mxu0 %v861
        %878 = vmatpush.xpose.msra.mxu0 %v858
        %879 = vmatmul.f32.gmra.mxu0 %v852
        %v880 = vpop.f32.mrf.mxu0
        %v881 = vadd.f32 0.0, %v880
        %882 = vmatmul.f32.gmra.mxu0 %v855
        %v883 = vpop.f32.mrf.mxu0
        %v884 = vadd.f32 0.0, %v883
        %885 = vdwg.mxu0
        %v887 = vsel %vm780, %v770, 0
        %v890 = vsel %vm780, %v771, 0
        %v893 = vsel %vm780, %v247, 0
        %v896 = vsel %vm780, %v248, 0
        %898 = vmatpush.xpose.msra.mxu0 0.0
        %899 = vmatpush.xpose.msra.mxu0 0.0
        %900 = vmatpush.xpose.msra.mxu0 0.0
        %901 = vmatpush.xpose.msra.mxu0 0.0
        %902 = vmatpush.xpose.msra.mxu0 0.0
        %903 = vmatpush.xpose.msra.mxu0 0.0
        %904 = vmatpush.xpose.msra.mxu0 0.0
        %905 = vmatpush.xpose.msra.mxu0 0.0
        %906 = vmatpush.xpose.msra.mxu0 0.0
        %907 = vmatpush.xpose.msra.mxu0 0.0
        %908 = vmatpush.xpose.msra.mxu0 0.0
        %909 = vmatpush.xpose.msra.mxu0 0.0
        %910 = vmatpush.xpose.msra.mxu0 0.0
        %911 = vmatpush.xpose.msra.mxu0 0.0
        %912 = vmatpush.xpose.msra.mxu0 %v896
        %913 = vmatpush.xpose.msra.mxu0 %v893
        %914 = vmatmul.f32.gmra.mxu0 %v887
        %v915 = vpop.f32.mrf.mxu0
        %v916 = vadd.f32 0.0, %v915
        %917 = vmatmul.f32.gmra.mxu0 %v890
        %v918 = vpop.f32.mrf.mxu0
        %v919 = vadd.f32 0.0, %v918
        %920 = vdwg.mxu0
        %v922 = vsel %vm780, %v772, 0
        %v925 = vsel %vm780, %v773, 0
        %v928 = vsel %vm780, %v249, 0
        %v931 = vsel %vm780, %v250, 0
        %933 = vmatpush.xpose.msra.mxu0 0.0
        %934 = vmatpush.xpose.msra.mxu0 0.0
        %935 = vmatpush.xpose.msra.mxu0 0.0
        %936 = vmatpush.xpose.msra.mxu0 0.0
        %937 = vmatpush.xpose.msra.mxu0 0.0
        %938 = vmatpush.xpose.msra.mxu0 0.0
        %939 = vmatpush.xpose.msra.mxu0 0.0
        %940 = vmatpush.xpose.msra.mxu0 0.0
        %941 = vmatpush.xpose.msra.mxu0 0.0
        %942 = vmatpush.xpose.msra.mxu0 0.0
        %943 = vmatpush.xpose.msra.mxu0 0.0
        %944 = vmatpush.xpose.msra.mxu0 0.0
        %945 = vmatpush.xpose.msra.mxu0 0.0
        %946 = vmatpush.xpose.msra.mxu0 0.0
        %947 = vmatpush.xpose.msra.mxu0 %v931
        %948 = vmatpush.xpose.msra.mxu0 %v928
        %949 = vmatmul.f32.gmra.mxu0 %v922
        %v950 = vpop.f32.mrf.mxu0
        %v951 = vadd.f32 0.0, %v950
        %952 = vmatmul.f32.gmra.mxu0 %v925
        %v953 = vpop.f32.mrf.mxu0
        %v954 = vadd.f32 0.0, %v953
        %955 = vdwg.mxu0
        %v957 = vsel %vm780, %v774, 0
        %v960 = vsel %vm780, %v775, 0
        %v963 = vsel %vm780, %v251, 0
        %v966 = vsel %vm780, %v252, 0
        %968 = vmatpush.xpose.msra.mxu0 0.0
        %969 = vmatpush.xpose.msra.mxu0 0.0
        %970 = vmatpush.xpose.msra.mxu0 0.0
        %971 = vmatpush.xpose.msra.mxu0 0.0
        %972 = vmatpush.xpose.msra.mxu0 0.0
        %973 = vmatpush.xpose.msra.mxu0 0.0
        %974 = vmatpush.xpose.msra.mxu0 0.0
        %975 = vmatpush.xpose.msra.mxu0 0.0
        %976 = vmatpush.xpose.msra.mxu0 0.0
        %977 = vmatpush.xpose.msra.mxu0 0.0
        %978 = vmatpush.xpose.msra.mxu0 0.0
        %979 = vmatpush.xpose.msra.mxu0 0.0
        %980 = vmatpush.xpose.msra.mxu0 0.0
        %981 = vmatpush.xpose.msra.mxu0 0.0
        %982 = vmatpush.xpose.msra.mxu0 %v966
        %983 = vmatpush.xpose.msra.mxu0 %v963
        %984 = vmatmul.f32.gmra.mxu0 %v957
        %v985 = vpop.f32.mrf.mxu0
        %v986 = vadd.f32 0.0, %v985
        %987 = vmatmul.f32.gmra.mxu0 %v960
        %v988 = vpop.f32.mrf.mxu0
        %v989 = vadd.f32 0.0, %v988
        %990 = vdwg.mxu0
        %v992 = vsel %vm780, %v776, 0
        %v995 = vsel %vm780, %v777, 0
        %v998 = vsel %vm780, %v253, 0
        %v1001 = vsel %vm780, %v254, 0
        %1003 = vmatpush.xpose.msra.mxu0 0.0
        %1004 = vmatpush.xpose.msra.mxu0 0.0
        %1005 = vmatpush.xpose.msra.mxu0 0.0
        %1006 = vmatpush.xpose.msra.mxu0 0.0
        %1007 = vmatpush.xpose.msra.mxu0 0.0
        %1008 = vmatpush.xpose.msra.mxu0 0.0
        %1009 = vmatpush.xpose.msra.mxu0 0.0
        %1010 = vmatpush.xpose.msra.mxu0 0.0
        %1011 = vmatpush.xpose.msra.mxu0 0.0
        %1012 = vmatpush.xpose.msra.mxu0 0.0
        %1013 = vmatpush.xpose.msra.mxu0 0.0
        %1014 = vmatpush.xpose.msra.mxu0 0.0
        %1015 = vmatpush.xpose.msra.mxu0 0.0
        %1016 = vmatpush.xpose.msra.mxu0 0.0
        %1017 = vmatpush.xpose.msra.mxu0 %v1001
        %1018 = vmatpush.xpose.msra.mxu0 %v998
        %1019 = vmatmul.f32.gmra.mxu0 %v992
        %v1020 = vpop.f32.mrf.mxu0
        %v1021 = vadd.f32 0.0, %v1020
        %1022 = vmatmul.f32.gmra.mxu0 %v995
        %v1023 = vpop.f32.mrf.mxu0
        %v1024 = vadd.f32 0.0, %v1023
        %1025 = vdwg.mxu0
        %v1027 = vsel %vm780, %v778, 0
        %v1030 = vsel %vm780, %v779, 0
        %v1033 = vsel %vm780, %v255, 0
        %v1036 = vsel %vm780, %v256, 0
        %1038 = vmatpush.xpose.msra.mxu0 0.0
        %1039 = vmatpush.xpose.msra.mxu0 0.0
        %1040 = vmatpush.xpose.msra.mxu0 0.0
        %1041 = vmatpush.xpose.msra.mxu0 0.0
        %1042 = vmatpush.xpose.msra.mxu0 0.0
        %1043 = vmatpush.xpose.msra.mxu0 0.0
        %1044 = vmatpush.xpose.msra.mxu0 0.0
        %1045 = vmatpush.xpose.msra.mxu0 0.0
        %1046 = vmatpush.xpose.msra.mxu0 0.0
        %1047 = vmatpush.xpose.msra.mxu0 0.0
        %1048 = vmatpush.xpose.msra.mxu0 0.0
        %1049 = vmatpush.xpose.msra.mxu0 0.0
        %1050 = vmatpush.xpose.msra.mxu0 0.0
        %1051 = vmatpush.xpose.msra.mxu0 0.0
        %1052 = vmatpush.xpose.msra.mxu0 %v1036
        %1053 = vmatpush.xpose.msra.mxu0 %v1033
        %1054 = vmatmul.f32.gmra.mxu0 %v1027
        %v1055 = vpop.f32.mrf.mxu0
        %v1056 = vadd.f32 0.0, %v1055
        %1057 = vmatmul.f32.gmra.mxu0 %v1030
        %v1058 = vpop.f32.mrf.mxu0
        %v1059 = vadd.f32 0.0, %v1058
        %1060 = vdwg.mxu0
        %vm1061 = vcmp.ge.f32.partialorder %v811, 0.0
        %vm1062 = vcmp.ge.f32.partialorder %v814, 0.0
        %vm1063 = vcmp.ge.f32.partialorder %v846, 0.0
        %vm1064 = vcmp.ge.f32.partialorder %v849, 0.0
        %vm1065 = vcmp.ge.f32.partialorder %v881, 0.0
        %vm1066 = vcmp.ge.f32.partialorder %v884, 0.0
        %vm1067 = vcmp.ge.f32.partialorder %v916, 0.0
        %vm1068 = vcmp.ge.f32.partialorder %v919, 0.0
        %vm1069 = vcmp.ge.f32.partialorder %v951, 0.0
        %vm1070 = vcmp.ge.f32.partialorder %v954, 0.0
        %vm1071 = vcmp.ge.f32.partialorder %v986, 0.0
        %vm1072 = vcmp.ge.f32.partialorder %v989, 0.0
        %vm1073 = vcmp.ge.f32.partialorder %v1021, 0.0
        %vm1074 = vcmp.ge.f32.partialorder %v1024, 0.0
        %vm1075 = vcmp.ge.f32.partialorder %v1056, 0.0
        %vm1076 = vcmp.ge.f32.partialorder %v1059, 0.0
        %v1077 = vmul.f32 %v811, 0.01
        %v1078 = vmul.f32 %v814, 0.01
        %v1079 = vmul.f32 %v846, 0.01
        %v1080 = vmul.f32 %v849, 0.01
        %v1081 = vmul.f32 %v881, 0.01
        %v1082 = vmul.f32 %v884, 0.01
        %v1083 = vmul.f32 %v916, 0.01
        %v1084 = vmul.f32 %v919, 0.01
        %v1085 = vmul.f32 %v951, 0.01
        %v1086 = vmul.f32 %v954, 0.01
        %v1087 = vmul.f32 %v986, 0.01
        %v1088 = vmul.f32 %v989, 0.01
        %v1089 = vmul.f32 %v1021, 0.01
        %v1090 = vmul.f32 %v1024, 0.01
        %v1091 = vmul.f32 %v1056, 0.01
        %v1092 = vmul.f32 %v1059, 0.01
        %v1093 = vsel %vm1061, %v811, %v1077
        %v1094 = vsel %vm1062, %v814, %v1078
        %v1095 = vsel %vm1063, %v846, %v1079
        %v1096 = vsel %vm1064, %v849, %v1080
        %v1097 = vsel %vm1065, %v881, %v1081
        %v1098 = vsel %vm1066, %v884, %v1082
        %v1099 = vsel %vm1067, %v916, %v1083
        %v1100 = vsel %vm1068, %v919, %v1084
        %v1101 = vsel %vm1069, %v951, %v1085
        %v1102 = vsel %vm1070, %v954, %v1086
        %v1103 = vsel %vm1071, %v986, %v1087
        %v1104 = vsel %vm1072, %v989, %v1088
        %v1105 = vsel %vm1073, %v1021, %v1089
        %v1106 = vsel %vm1074, %v1024, %v1090
        %v1107 = vsel %vm1075, %v1056, %v1091
        %v1108 = vsel %vm1076, %v1059, %v1092
        %1125 = vrot.lane.b32.xlu0 %v1093, 120
        %v1126 = vpop.permute.xlu0 %1125
        %1127 = vrot.lane.b32.xlu0 %v1094, 120
        %v1128 = vpop.permute.xlu0 %1127
        %1129 = vrot.lane.b32.xlu0 %v1095, 120
        %v1130 = vpop.permute.xlu0 %1129
        %1131 = vrot.lane.b32.xlu0 %v1096, 120
        %v1132 = vpop.permute.xlu0 %1131
        %1133 = vrot.lane.b32.xlu0 %v1097, 120
        %v1134 = vpop.permute.xlu0 %1133
        %1135 = vrot.lane.b32.xlu0 %v1098, 120
        %v1136 = vpop.permute.xlu0 %1135
        %1137 = vrot.lane.b32.xlu0 %v1099, 120
        %v1138 = vpop.permute.xlu0 %1137
        %1139 = vrot.lane.b32.xlu0 %v1100, 120
        %v1140 = vpop.permute.xlu0 %1139
        %1141 = vrot.lane.b32.xlu0 %v1101, 120
        %v1142 = vpop.permute.xlu0 %1141
        %1143 = vrot.lane.b32.xlu0 %v1102, 120
        %v1144 = vpop.permute.xlu0 %1143
        %1145 = vrot.lane.b32.xlu0 %v1103, 120
        %v1146 = vpop.permute.xlu0 %1145
        %1147 = vrot.lane.b32.xlu0 %v1104, 120
        %v1148 = vpop.permute.xlu0 %1147
        %1149 = vrot.lane.b32.xlu0 %v1105, 120
        %v1150 = vpop.permute.xlu0 %1149
        %1151 = vrot.lane.b32.xlu0 %v1106, 120
        %v1152 = vpop.permute.xlu0 %1151
        %1153 = vrot.lane.b32.xlu0 %v1107, 120
        %v1154 = vpop.permute.xlu0 %1153
        %1155 = vrot.lane.b32.xlu0 %v1108, 120
        %v1156 = vpop.permute.xlu0 %1155
        %v1173 = vrot.slane %v1126, 7
        %v1174 = vrot.slane %v1130, 7
        %v1175 = vrot.slane %v1134, 7
        %v1176 = vrot.slane %v1138, 7
        %v1177 = vrot.slane %v1142, 7
        %v1178 = vrot.slane %v1146, 7
        %v1179 = vrot.slane %v1150, 7
        %v1180 = vrot.slane %v1154, 7
        %v1181 = vrot.slane %v1128, 7
        %v1182 = vrot.slane %v1132, 7
        %v1183 = vrot.slane %v1136, 7
        %v1184 = vrot.slane %v1140, 7
        %v1185 = vrot.slane %v1144, 7
        %v1186 = vrot.slane %v1148, 7
        %v1187 = vrot.slane %v1152, 7
        %v1188 = vrot.slane %v1156, 7
        %v1189 = vsel %vm415, %v1173, %v1181
        %v1190 = vsel %vm415, %v1174, %v1182
        %v1191 = vsel %vm415, %v1175, %v1183
        %v1192 = vsel %vm415, %v1176, %v1184
        %v1193 = vsel %vm415, %v1177, %v1185
        %v1194 = vsel %vm415, %v1178, %v1186
        %v1195 = vsel %vm415, %v1179, %v1187
        %v1196 = vsel %vm415, %v1180, %v1188
        %v1197 = vsel %vm415, %v1181, %v1173
        %v1198 = vsel %vm415, %v1182, %v1174
        %v1199 = vsel %vm415, %v1183, %v1175
        %v1200 = vsel %vm415, %v1184, %v1176
        %v1201 = vsel %vm415, %v1185, %v1177
        %v1202 = vsel %vm415, %v1186, %v1178
        %v1203 = vsel %vm415, %v1187, %v1179
        %v1204 = vsel %vm415, %v1188, %v1180
        %v1205 = vrot.slane %v1126, 1
        %v1206 = vrot.slane %v1130, 1
        %v1207 = vrot.slane %v1134, 1
        %v1208 = vrot.slane %v1138, 1
        %v1209 = vrot.slane %v1142, 1
        %v1210 = vrot.slane %v1146, 1
        %v1211 = vrot.slane %v1150, 1
        %v1212 = vrot.slane %v1154, 1
        %v1213 = vrot.slane %v1128, 1
        %v1214 = vrot.slane %v1132, 1
        %v1215 = vrot.slane %v1136, 1
        %v1216 = vrot.slane %v1140, 1
        %v1217 = vrot.slane %v1144, 1
        %v1218 = vrot.slane %v1148, 1
        %v1219 = vrot.slane %v1152, 1
        %v1220 = vrot.slane %v1156, 1
        %v1221 = vsel %vm488, %v1205, %v1213
        %v1222 = vsel %vm488, %v1206, %v1214
        %v1223 = vsel %vm488, %v1207, %v1215
        %v1224 = vsel %vm488, %v1208, %v1216
        %v1225 = vsel %vm488, %v1209, %v1217
        %v1226 = vsel %vm488, %v1210, %v1218
        %v1227 = vsel %vm488, %v1211, %v1219
        %v1228 = vsel %vm488, %v1212, %v1220
        %v1229 = vsel %vm488, %v1213, %v1205
        %v1230 = vsel %vm488, %v1214, %v1206
        %v1231 = vsel %vm488, %v1215, %v1207
        %v1232 = vsel %vm488, %v1216, %v1208
        %v1233 = vsel %vm488, %v1217, %v1209
        %v1234 = vsel %vm488, %v1218, %v1210
        %v1235 = vsel %vm488, %v1219, %v1211
        %v1236 = vsel %vm488, %v1220, %v1212
        %v1237 = vsel %vm438, %v1197, 0.0
        %v1238 = vsel %vm439, %v1189, 0.0
        %v1239 = vsel %vm438, %v1198, 0.0
        %v1240 = vsel %vm439, %v1190, 0.0
        %v1241 = vsel %vm438, %v1199, 0.0
        %v1242 = vsel %vm439, %v1191, 0.0
        %v1243 = vsel %vm438, %v1200, 0.0
        %v1244 = vsel %vm439, %v1192, 0.0
        %v1245 = vsel %vm438, %v1201, 0.0
        %v1246 = vsel %vm439, %v1193, 0.0
        %v1247 = vsel %vm438, %v1202, 0.0
        %v1248 = vsel %vm439, %v1194, 0.0
        %v1249 = vsel %vm438, %v1203, 0.0
        %v1250 = vsel %vm439, %v1195, 0.0
        %v1251 = vsel %vm438, %v1204, 0.0
        %v1252 = vsel %vm439, %v1196, 0.0
        %v1253 = vsel %vm511, %v1221, 0.0
        %v1254 = vsel %vm512, %v1229, 0.0
        %v1255 = vsel %vm511, %v1222, 0.0
        %v1256 = vsel %vm512, %v1230, 0.0
        %v1257 = vsel %vm511, %v1223, 0.0
        %v1258 = vsel %vm512, %v1231, 0.0
        %v1259 = vsel %vm511, %v1224, 0.0
        %v1260 = vsel %vm512, %v1232, 0.0
        %v1261 = vsel %vm511, %v1225, 0.0
        %v1262 = vsel %vm512, %v1233, 0.0
        %v1263 = vsel %vm511, %v1226, 0.0
        %v1264 = vsel %vm512, %v1234, 0.0
        %v1265 = vsel %vm511, %v1227, 0.0
        %v1266 = vsel %vm512, %v1235, 0.0
        %v1267 = vsel %vm511, %v1228, 0.0
        %v1268 = vsel %vm512, %v1236, 0.0
        %1285 = vrot.lane.b32.xlu0 %v1237, 8
        %v1286 = vpop.permute.xlu0 %1285
        %1287 = vrot.lane.b32.xlu0 %v1238, 8
        %v1288 = vpop.permute.xlu0 %1287
        %1289 = vrot.lane.b32.xlu0 %v1239, 8
        %v1290 = vpop.permute.xlu0 %1289
        %1291 = vrot.lane.b32.xlu0 %v1240, 8
        %v1292 = vpop.permute.xlu0 %1291
        %1293 = vrot.lane.b32.xlu0 %v1241, 8
        %v1294 = vpop.permute.xlu0 %1293
        %1295 = vrot.lane.b32.xlu0 %v1242, 8
        %v1296 = vpop.permute.xlu0 %1295
        %1297 = vrot.lane.b32.xlu0 %v1243, 8
        %v1298 = vpop.permute.xlu0 %1297
        %1299 = vrot.lane.b32.xlu0 %v1244, 8
        %v1300 = vpop.permute.xlu0 %1299
        %1301 = vrot.lane.b32.xlu0 %v1245, 8
        %v1302 = vpop.permute.xlu0 %1301
        %1303 = vrot.lane.b32.xlu0 %v1246, 8
        %v1304 = vpop.permute.xlu0 %1303
        %1305 = vrot.lane.b32.xlu0 %v1247, 8
        %v1306 = vpop.permute.xlu0 %1305
        %1307 = vrot.lane.b32.xlu0 %v1248, 8
        %v1308 = vpop.permute.xlu0 %1307
        %1309 = vrot.lane.b32.xlu0 %v1249, 8
        %v1310 = vpop.permute.xlu0 %1309
        %1311 = vrot.lane.b32.xlu0 %v1250, 8
        %v1312 = vpop.permute.xlu0 %1311
        %1313 = vrot.lane.b32.xlu0 %v1251, 8
        %v1314 = vpop.permute.xlu0 %1313
        %1315 = vrot.lane.b32.xlu0 %v1252, 8
        %v1316 = vpop.permute.xlu0 %1315
        %1333 = vrot.lane.b32.xlu0 %v1093, 8
        %v1334 = vpop.permute.xlu0 %1333
        %1335 = vrot.lane.b32.xlu0 %v1094, 8
        %v1336 = vpop.permute.xlu0 %1335
        %1337 = vrot.lane.b32.xlu0 %v1095, 8
        %v1338 = vpop.permute.xlu0 %1337
        %1339 = vrot.lane.b32.xlu0 %v1096, 8
        %v1340 = vpop.permute.xlu0 %1339
        %1341 = vrot.lane.b32.xlu0 %v1097, 8
        %v1342 = vpop.permute.xlu0 %1341
        %1343 = vrot.lane.b32.xlu0 %v1098, 8
        %v1344 = vpop.permute.xlu0 %1343
        %1345 = vrot.lane.b32.xlu0 %v1099, 8
        %v1346 = vpop.permute.xlu0 %1345
        %1347 = vrot.lane.b32.xlu0 %v1100, 8
        %v1348 = vpop.permute.xlu0 %1347
        %1349 = vrot.lane.b32.xlu0 %v1101, 8
        %v1350 = vpop.permute.xlu0 %1349
        %1351 = vrot.lane.b32.xlu0 %v1102, 8
        %v1352 = vpop.permute.xlu0 %1351
        %1353 = vrot.lane.b32.xlu0 %v1103, 8
        %v1354 = vpop.permute.xlu0 %1353
        %1355 = vrot.lane.b32.xlu0 %v1104, 8
        %v1356 = vpop.permute.xlu0 %1355
        %1357 = vrot.lane.b32.xlu0 %v1105, 8
        %v1358 = vpop.permute.xlu0 %1357
        %1359 = vrot.lane.b32.xlu0 %v1106, 8
        %v1360 = vpop.permute.xlu0 %1359
        %1361 = vrot.lane.b32.xlu0 %v1107, 8
        %v1362 = vpop.permute.xlu0 %1361
        %1363 = vrot.lane.b32.xlu0 %v1108, 8
        %v1364 = vpop.permute.xlu0 %1363
        %1397 = vrot.lane.b32.xlu0 %v1253, 24
        %v1398 = vpop.permute.xlu0 %1397
        %1399 = vrot.lane.b32.xlu0 %v1254, 24
        %v1400 = vpop.permute.xlu0 %1399
        %1401 = vrot.lane.b32.xlu0 %v1255, 24
        %v1402 = vpop.permute.xlu0 %1401
        %1403 = vrot.lane.b32.xlu0 %v1256, 24
        %v1404 = vpop.permute.xlu0 %1403
        %1405 = vrot.lane.b32.xlu0 %v1257, 24
        %v1406 = vpop.permute.xlu0 %1405
        %1407 = vrot.lane.b32.xlu0 %v1258, 24
        %v1408 = vpop.permute.xlu0 %1407
        %1409 = vrot.lane.b32.xlu0 %v1259, 24
        %v1410 = vpop.permute.xlu0 %1409
        %1411 = vrot.lane.b32.xlu0 %v1260, 24
        %v1412 = vpop.permute.xlu0 %1411
        %1413 = vrot.lane.b32.xlu0 %v1261, 24
        %v1414 = vpop.permute.xlu0 %1413
        %1415 = vrot.lane.b32.xlu0 %v1262, 24
        %v1416 = vpop.permute.xlu0 %1415
        %1417 = vrot.lane.b32.xlu0 %v1263, 24
        %v1418 = vpop.permute.xlu0 %1417
        %1419 = vrot.lane.b32.xlu0 %v1264, 24
        %v1420 = vpop.permute.xlu0 %1419
        %1421 = vrot.lane.b32.xlu0 %v1265, 24
        %v1422 = vpop.permute.xlu0 %1421
        %1423 = vrot.lane.b32.xlu0 %v1266, 24
        %v1424 = vpop.permute.xlu0 %1423
        %1425 = vrot.lane.b32.xlu0 %v1267, 24
        %v1426 = vpop.permute.xlu0 %1425
        %1427 = vrot.lane.b32.xlu0 %v1268, 24
        %v1428 = vpop.permute.xlu0 %1427
        %vm1445 = vcmask 64512
        %v1446 = vsel %vm1445, %v1093, %v1286
        %v1447 = vsel %vm1445, %v1094, %v1288
        %v1448 = vsel %vm1445, %v1095, %v1290
        %v1449 = vsel %vm1445, %v1096, %v1292
        %v1450 = vsel %vm1445, %v1097, %v1294
        %v1451 = vsel %vm1445, %v1098, %v1296
        %v1452 = vsel %vm1445, %v1099, %v1298
        %v1453 = vsel %vm1445, %v1100, %v1300
        %v1454 = vsel %vm1445, %v1101, %v1302
        %v1455 = vsel %vm1445, %v1102, %v1304
        %v1456 = vsel %vm1445, %v1103, %v1306
        %v1457 = vsel %vm1445, %v1104, %v1308
        %v1458 = vsel %vm1445, %v1105, %v1310
        %v1459 = vsel %vm1445, %v1106, %v1312
        %v1460 = vsel %vm1445, %v1107, %v1314
        %v1461 = vsel %vm1445, %v1108, %v1316
        %vm1462 = vcmask 130048
        %v1463 = vsel %vm1462, %v1446, %v1334
        %v1464 = vsel %vm1462, %v1447, %v1336
        %v1465 = vsel %vm1462, %v1448, %v1338
        %v1466 = vsel %vm1462, %v1449, %v1340
        %v1467 = vsel %vm1462, %v1450, %v1342
        %v1468 = vsel %vm1462, %v1451, %v1344
        %v1469 = vsel %vm1462, %v1452, %v1346
        %v1470 = vsel %vm1462, %v1453, %v1348
        %v1471 = vsel %vm1462, %v1454, %v1350
        %v1472 = vsel %vm1462, %v1455, %v1352
        %v1473 = vsel %vm1462, %v1456, %v1354
        %v1474 = vsel %vm1462, %v1457, %v1356
        %v1475 = vsel %vm1462, %v1458, %v1358
        %v1476 = vsel %vm1462, %v1459, %v1360
        %v1477 = vsel %vm1462, %v1460, %v1362
        %v1478 = vsel %vm1462, %v1461, %v1364
        %vm1479 = vcmask 195584
        %v1480 = vsel %vm1479, %v1463, %v1398
        %v1481 = vsel %vm1479, %v1464, %v1400
        %v1482 = vsel %vm1479, %v1465, %v1402
        %v1483 = vsel %vm1479, %v1466, %v1404
        %v1484 = vsel %vm1479, %v1467, %v1406
        %v1485 = vsel %vm1479, %v1468, %v1408
        %v1486 = vsel %vm1479, %v1469, %v1410
        %v1487 = vsel %vm1479, %v1470, %v1412
        %v1488 = vsel %vm1479, %v1471, %v1414
        %v1489 = vsel %vm1479, %v1472, %v1416
        %v1490 = vsel %vm1479, %v1473, %v1418
        %v1491 = vsel %vm1479, %v1474, %v1420
        %v1492 = vsel %vm1479, %v1475, %v1422
        %v1493 = vsel %vm1479, %v1476, %v1424
        %v1494 = vsel %vm1479, %v1477, %v1426
        %v1495 = vsel %vm1479, %v1478, %v1428
        %v1497 = vsel %vm746, %v1480, 0
        %v1500 = vsel %vm746, %v1481, 0
        %v1503 = vsel %vm746, %v257, 0
        %v1506 = vsel %vm746, %v258, 0
        %v1509 = vsel %vm746, %v259, 0
        %v1512 = vsel %vm746, %v260, 0
        %v1515 = vsel %vm746, %v261, 0
        %v1518 = vsel %vm746, %v262, 0
        %v1521 = vsel %vm746, %v263, 0
        %v1524 = vsel %vm746, %v264, 0
        %1526 = vmatpush.xpose.msra.mxu0 0.0
        %1527 = vmatpush.xpose.msra.mxu0 0.0
        %1528 = vmatpush.xpose.msra.mxu0 0.0
        %1529 = vmatpush.xpose.msra.mxu0 0.0
        %1530 = vmatpush.xpose.msra.mxu0 0.0
        %1531 = vmatpush.xpose.msra.mxu0 0.0
        %1532 = vmatpush.xpose.msra.mxu0 0.0
        %1533 = vmatpush.xpose.msra.mxu0 0.0
        %1534 = vmatpush.xpose.msra.mxu0 %v1524
        %1535 = vmatpush.xpose.msra.mxu0 %v1521
        %1536 = vmatpush.xpose.msra.mxu0 %v1518
        %1537 = vmatpush.xpose.msra.mxu0 %v1515
        %1538 = vmatpush.xpose.msra.mxu0 %v1512
        %1539 = vmatpush.xpose.msra.mxu0 %v1509
        %1540 = vmatpush.xpose.msra.mxu0 %v1506
        %1541 = vmatpush.xpose.msra.mxu0 %v1503
        %1542 = vmatmul.f32.gmra.mxu0 %v1497
        %v1543 = vpop.f32.mrf.mxu0
        %v1544 = vadd.f32 0.0, %v1543
        %1545 = vmatmul.f32.gmra.mxu0 %v1500
        %v1546 = vpop.f32.mrf.mxu0
        %v1547 = vadd.f32 0.0, %v1546
        %1548 = vdwg.mxu0
        %v1550 = vsel %vm746, %v1482, 0
        %v1553 = vsel %vm746, %v1483, 0
        %v1556 = vsel %vm746, %v265, 0
        %v1559 = vsel %vm746, %v266, 0
        %v1562 = vsel %vm746, %v267, 0
        %v1565 = vsel %vm746, %v268, 0
        %v1568 = vsel %vm746, %v269, 0
        %v1571 = vsel %vm746, %v270, 0
        %v1574 = vsel %vm746, %v271, 0
        %v1577 = vsel %vm746, %v272, 0
        %1579 = vmatpush.xpose.msra.mxu0 0.0
        %1580 = vmatpush.xpose.msra.mxu0 0.0
        %1581 = vmatpush.xpose.msra.mxu0 0.0
        %1582 = vmatpush.xpose.msra.mxu0 0.0
        %1583 = vmatpush.xpose.msra.mxu0 0.0
        %1584 = vmatpush.xpose.msra.mxu0 0.0
        %1585 = vmatpush.xpose.msra.mxu0 0.0
        %1586 = vmatpush.xpose.msra.mxu0 0.0
        %1587 = vmatpush.xpose.msra.mxu0 %v1577
        %1588 = vmatpush.xpose.msra.mxu0 %v1574
        %1589 = vmatpush.xpose.msra.mxu0 %v1571
        %1590 = vmatpush.xpose.msra.mxu0 %v1568
        %1591 = vmatpush.xpose.msra.mxu0 %v1565
        %1592 = vmatpush.xpose.msra.mxu0 %v1562
        %1593 = vmatpush.xpose.msra.mxu0 %v1559
        %1594 = vmatpush.xpose.msra.mxu0 %v1556
        %1595 = vmatmul.f32.gmra.mxu0 %v1550
        %v1596 = vpop.f32.mrf.mxu0
        %v1597 = vadd.f32 0.0, %v1596
        %1598 = vmatmul.f32.gmra.mxu0 %v1553
        %v1599 = vpop.f32.mrf.mxu0
        %v1600 = vadd.f32 0.0, %v1599
        %1601 = vdwg.mxu0
        %v1603 = vsel %vm746, %v1484, 0
        %v1606 = vsel %vm746, %v1485, 0
        %v1609 = vsel %vm746, %v273, 0
        %v1612 = vsel %vm746, %v274, 0
        %v1615 = vsel %vm746, %v275, 0
        %v1618 = vsel %vm746, %v276, 0
        %v1621 = vsel %vm746, %v277, 0
        %v1624 = vsel %vm746, %v278, 0
        %v1627 = vsel %vm746, %v279, 0
        %v1630 = vsel %vm746, %v280, 0
        %1632 = vmatpush.xpose.msra.mxu0 0.0
        %1633 = vmatpush.xpose.msra.mxu0 0.0
        %1634 = vmatpush.xpose.msra.mxu0 0.0
        %1635 = vmatpush.xpose.msra.mxu0 0.0
        %1636 = vmatpush.xpose.msra.mxu0 0.0
        %1637 = vmatpush.xpose.msra.mxu0 0.0
        %1638 = vmatpush.xpose.msra.mxu0 0.0
        %1639 = vmatpush.xpose.msra.mxu0 0.0
        %1640 = vmatpush.xpose.msra.mxu0 %v1630
        %1641 = vmatpush.xpose.msra.mxu0 %v1627
        %1642 = vmatpush.xpose.msra.mxu0 %v1624
        %1643 = vmatpush.xpose.msra.mxu0 %v1621
        %1644 = vmatpush.xpose.msra.mxu0 %v1618
        %1645 = vmatpush.xpose.msra.mxu0 %v1615
        %1646 = vmatpush.xpose.msra.mxu0 %v1612
        %1647 = vmatpush.xpose.msra.mxu0 %v1609
        %1648 = vmatmul.f32.gmra.mxu0 %v1603
        %v1649 = vpop.f32.mrf.mxu0
        %v1650 = vadd.f32 0.0, %v1649
        %1651 = vmatmul.f32.gmra.mxu0 %v1606
        %v1652 = vpop.f32.mrf.mxu0
        %v1653 = vadd.f32 0.0, %v1652
        %1654 = vdwg.mxu0
        %v1656 = vsel %vm746, %v1486, 0
        %v1659 = vsel %vm746, %v1487, 0
        %v1662 = vsel %vm746, %v281, 0
        %v1665 = vsel %vm746, %v282, 0
        %v1668 = vsel %vm746, %v283, 0
        %v1671 = vsel %vm746, %v284, 0
        %v1674 = vsel %vm746, %v285, 0
        %v1677 = vsel %vm746, %v286, 0
        %v1680 = vsel %vm746, %v287, 0
        %v1683 = vsel %vm746, %v288, 0
        %1685 = vmatpush.xpose.msra.mxu0 0.0
        %1686 = vmatpush.xpose.msra.mxu0 0.0
        %1687 = vmatpush.xpose.msra.mxu0 0.0
        %1688 = vmatpush.xpose.msra.mxu0 0.0
        %1689 = vmatpush.xpose.msra.mxu0 0.0
        %1690 = vmatpush.xpose.msra.mxu0 0.0
        %1691 = vmatpush.xpose.msra.mxu0 0.0
        %1692 = vmatpush.xpose.msra.mxu0 0.0
        %1693 = vmatpush.xpose.msra.mxu0 %v1683
        %1694 = vmatpush.xpose.msra.mxu0 %v1680
        %1695 = vmatpush.xpose.msra.mxu0 %v1677
        %1696 = vmatpush.xpose.msra.mxu0 %v1674
        %1697 = vmatpush.xpose.msra.mxu0 %v1671
        %1698 = vmatpush.xpose.msra.mxu0 %v1668
        %1699 = vmatpush.xpose.msra.mxu0 %v1665
        %1700 = vmatpush.xpose.msra.mxu0 %v1662
        %1701 = vmatmul.f32.gmra.mxu0 %v1656
        %v1702 = vpop.f32.mrf.mxu0
        %v1703 = vadd.f32 0.0, %v1702
        %1704 = vmatmul.f32.gmra.mxu0 %v1659
        %v1705 = vpop.f32.mrf.mxu0
        %v1706 = vadd.f32 0.0, %v1705
        %1707 = vdwg.mxu0
        %v1709 = vsel %vm746, %v1488, 0
        %v1712 = vsel %vm746, %v1489, 0
        %v1715 = vsel %vm746, %v289, 0
        %v1718 = vsel %vm746, %v290, 0
        %v1721 = vsel %vm746, %v291, 0
        %v1724 = vsel %vm746, %v292, 0
        %v1727 = vsel %vm746, %v293, 0
        %v1730 = vsel %vm746, %v294, 0
        %v1733 = vsel %vm746, %v295, 0
        %v1736 = vsel %vm746, %v296, 0
        %1738 = vmatpush.xpose.msra.mxu0 0.0
        %1739 = vmatpush.xpose.msra.mxu0 0.0
        %1740 = vmatpush.xpose.msra.mxu0 0.0
        %1741 = vmatpush.xpose.msra.mxu0 0.0
        %1742 = vmatpush.xpose.msra.mxu0 0.0
        %1743 = vmatpush.xpose.msra.mxu0 0.0
        %1744 = vmatpush.xpose.msra.mxu0 0.0
        %1745 = vmatpush.xpose.msra.mxu0 0.0
        %1746 = vmatpush.xpose.msra.mxu0 %v1736
        %1747 = vmatpush.xpose.msra.mxu0 %v1733
        %1748 = vmatpush.xpose.msra.mxu0 %v1730
        %1749 = vmatpush.xpose.msra.mxu0 %v1727
        %1750 = vmatpush.xpose.msra.mxu0 %v1724
        %1751 = vmatpush.xpose.msra.mxu0 %v1721
        %1752 = vmatpush.xpose.msra.mxu0 %v1718
        %1753 = vmatpush.xpose.msra.mxu0 %v1715
        %1754 = vmatmul.f32.gmra.mxu0 %v1709
        %v1755 = vpop.f32.mrf.mxu0
        %v1756 = vadd.f32 0.0, %v1755
        %1757 = vmatmul.f32.gmra.mxu0 %v1712
        %v1758 = vpop.f32.mrf.mxu0
        %v1759 = vadd.f32 0.0, %v1758
        %1760 = vdwg.mxu0
        %v1762 = vsel %vm746, %v1490, 0
        %v1765 = vsel %vm746, %v1491, 0
        %v1768 = vsel %vm746, %v297, 0
        %v1771 = vsel %vm746, %v298, 0
        %v1774 = vsel %vm746, %v299, 0
        %v1777 = vsel %vm746, %v300, 0
        %v1780 = vsel %vm746, %v301, 0
        %v1783 = vsel %vm746, %v302, 0
        %v1786 = vsel %vm746, %v303, 0
        %v1789 = vsel %vm746, %v304, 0
        %1791 = vmatpush.xpose.msra.mxu0 0.0
        %1792 = vmatpush.xpose.msra.mxu0 0.0
        %1793 = vmatpush.xpose.msra.mxu0 0.0
        %1794 = vmatpush.xpose.msra.mxu0 0.0
        %1795 = vmatpush.xpose.msra.mxu0 0.0
        %1796 = vmatpush.xpose.msra.mxu0 0.0
        %1797 = vmatpush.xpose.msra.mxu0 0.0
        %1798 = vmatpush.xpose.msra.mxu0 0.0
        %1799 = vmatpush.xpose.msra.mxu0 %v1789
        %1800 = vmatpush.xpose.msra.mxu0 %v1786
        %1801 = vmatpush.xpose.msra.mxu0 %v1783
        %1802 = vmatpush.xpose.msra.mxu0 %v1780
        %1803 = vmatpush.xpose.msra.mxu0 %v1777
        %1804 = vmatpush.xpose.msra.mxu0 %v1774
        %1805 = vmatpush.xpose.msra.mxu0 %v1771
        %1806 = vmatpush.xpose.msra.mxu0 %v1768
        %1807 = vmatmul.f32.gmra.mxu0 %v1762
        %v1808 = vpop.f32.mrf.mxu0
        %v1809 = vadd.f32 0.0, %v1808
        %1810 = vmatmul.f32.gmra.mxu0 %v1765
        %v1811 = vpop.f32.mrf.mxu0
        %v1812 = vadd.f32 0.0, %v1811
        %1813 = vdwg.mxu0
        %v1815 = vsel %vm746, %v1492, 0
        %v1818 = vsel %vm746, %v1493, 0
        %v1821 = vsel %vm746, %v305, 0
        %v1824 = vsel %vm746, %v306, 0
        %v1827 = vsel %vm746, %v307, 0
        %v1830 = vsel %vm746, %v308, 0
        %v1833 = vsel %vm746, %v309, 0
        %v1836 = vsel %vm746, %v310, 0
        %v1839 = vsel %vm746, %v311, 0
        %v1842 = vsel %vm746, %v312, 0
        %1844 = vmatpush.xpose.msra.mxu0 0.0
        %1845 = vmatpush.xpose.msra.mxu0 0.0
        %1846 = vmatpush.xpose.msra.mxu0 0.0
        %1847 = vmatpush.xpose.msra.mxu0 0.0
        %1848 = vmatpush.xpose.msra.mxu0 0.0
        %1849 = vmatpush.xpose.msra.mxu0 0.0
        %1850 = vmatpush.xpose.msra.mxu0 0.0
        %1851 = vmatpush.xpose.msra.mxu0 0.0
        %1852 = vmatpush.xpose.msra.mxu0 %v1842
        %1853 = vmatpush.xpose.msra.mxu0 %v1839
        %1854 = vmatpush.xpose.msra.mxu0 %v1836
        %1855 = vmatpush.xpose.msra.mxu0 %v1833
        %1856 = vmatpush.xpose.msra.mxu0 %v1830
        %1857 = vmatpush.xpose.msra.mxu0 %v1827
        %1858 = vmatpush.xpose.msra.mxu0 %v1824
        %1859 = vmatpush.xpose.msra.mxu0 %v1821
        %1860 = vmatmul.f32.gmra.mxu0 %v1815
        %v1861 = vpop.f32.mrf.mxu0
        %v1862 = vadd.f32 0.0, %v1861
        %1863 = vmatmul.f32.gmra.mxu0 %v1818
        %v1864 = vpop.f32.mrf.mxu0
        %v1865 = vadd.f32 0.0, %v1864
        %1866 = vdwg.mxu0
        %v1868 = vsel %vm746, %v1494, 0
        %v1871 = vsel %vm746, %v1495, 0
        %v1874 = vsel %vm746, %v313, 0
        %v1877 = vsel %vm746, %v314, 0
        %v1880 = vsel %vm746, %v315, 0
        %v1883 = vsel %vm746, %v316, 0
        %v1886 = vsel %vm746, %v317, 0
        %v1889 = vsel %vm746, %v318, 0
        %v1892 = vsel %vm746, %v319, 0
        %v1895 = vsel %vm746, %v320, 0
        %1897 = vmatpush.xpose.msra.mxu0 0.0
        %1898 = vmatpush.xpose.msra.mxu0 0.0
        %1899 = vmatpush.xpose.msra.mxu0 0.0
        %1900 = vmatpush.xpose.msra.mxu0 0.0
        %1901 = vmatpush.xpose.msra.mxu0 0.0
        %1902 = vmatpush.xpose.msra.mxu0 0.0
        %1903 = vmatpush.xpose.msra.mxu0 0.0
        %1904 = vmatpush.xpose.msra.mxu0 0.0
        %1905 = vmatpush.xpose.msra.mxu0 %v1895
        %1906 = vmatpush.xpose.msra.mxu0 %v1892
        %1907 = vmatpush.xpose.msra.mxu0 %v1889
        %1908 = vmatpush.xpose.msra.mxu0 %v1886
        %1909 = vmatpush.xpose.msra.mxu0 %v1883
        %1910 = vmatpush.xpose.msra.mxu0 %v1880
        %1911 = vmatpush.xpose.msra.mxu0 %v1877
        %1912 = vmatpush.xpose.msra.mxu0 %v1874
        %1913 = vmatmul.f32.gmra.mxu0 %v1868
        %v1914 = vpop.f32.mrf.mxu0
        %v1915 = vadd.f32 0.0, %v1914
        %1916 = vmatmul.f32.gmra.mxu0 %v1871
        %v1917 = vpop.f32.mrf.mxu0
        %v1918 = vadd.f32 0.0, %v1917
        %1919 = vdwg.mxu0
        %v1920 = vxor.u32 %v1544, 2147483648
        %v1921 = vxor.u32 %v1547, 2147483648
        %v1922 = vxor.u32 %v1597, 2147483648
        %v1923 = vxor.u32 %v1600, 2147483648
        %v1924 = vxor.u32 %v1650, 2147483648
        %v1925 = vxor.u32 %v1653, 2147483648
        %v1926 = vxor.u32 %v1703, 2147483648
        %v1927 = vxor.u32 %v1706, 2147483648
        %v1928 = vxor.u32 %v1756, 2147483648
        %v1929 = vxor.u32 %v1759, 2147483648
        %v1930 = vxor.u32 %v1809, 2147483648
        %v1931 = vxor.u32 %v1812, 2147483648
        %v1932 = vxor.u32 %v1862, 2147483648
        %v1933 = vxor.u32 %v1865, 2147483648
        %v1934 = vxor.u32 %v1915, 2147483648
        %v1935 = vxor.u32 %v1918, 2147483648
        %v1936 = vmul.f32 %v1920, 1.442695
        %v1937 = vpow.pop %v1936
        %v1938 = vmul.f32 %v1921, 1.442695
        %v1939 = vpow.pop %v1938
        %v1940 = vmul.f32 %v1922, 1.442695
        %v1941 = vpow.pop %v1940
        %v1942 = vmul.f32 %v1923, 1.442695
        %v1943 = vpow.pop %v1942
        %v1944 = vmul.f32 %v1924, 1.442695
        %v1945 = vpow.pop %v1944
        %v1946 = vmul.f32 %v1925, 1.442695
        %v1947 = vpow.pop %v1946
        %v1948 = vmul.f32 %v1926, 1.442695
        %v1949 = vpow.pop %v1948
        %v1950 = vmul.f32 %v1927, 1.442695
        %v1951 = vpow.pop %v1950
        %v1952 = vmul.f32 %v1928, 1.442695
        %v1953 = vpow.pop %v1952
        %v1954 = vmul.f32 %v1929, 1.442695
        %v1955 = vpow.pop %v1954
        %v1956 = vmul.f32 %v1930, 1.442695
        %v1957 = vpow.pop %v1956
        %v1958 = vmul.f32 %v1931, 1.442695
        %v1959 = vpow.pop %v1958
        %v1960 = vmul.f32 %v1932, 1.442695
        %v1961 = vpow.pop %v1960
        %v1962 = vmul.f32 %v1933, 1.442695
        %v1963 = vpow.pop %v1962
        %v1964 = vmul.f32 %v1934, 1.442695
        %v1965 = vpow.pop %v1964
        %v1966 = vmul.f32 %v1935, 1.442695
        %v1967 = vpow.pop %v1966
        %v1968 = vadd.f32 %v1937, 1.0
        %v1969 = vadd.f32 %v1939, 1.0
        %v1970 = vadd.f32 %v1941, 1.0
        %v1971 = vadd.f32 %v1943, 1.0
        %v1972 = vadd.f32 %v1945, 1.0
        %v1973 = vadd.f32 %v1947, 1.0
        %v1974 = vadd.f32 %v1949, 1.0
        %v1975 = vadd.f32 %v1951, 1.0
        %v1976 = vadd.f32 %v1953, 1.0
        %v1977 = vadd.f32 %v1955, 1.0
        %v1978 = vadd.f32 %v1957, 1.0
        %v1979 = vadd.f32 %v1959, 1.0
        %v1980 = vadd.f32 %v1961, 1.0
        %v1981 = vadd.f32 %v1963, 1.0
        %v1982 = vadd.f32 %v1965, 1.0
        %v1983 = vadd.f32 %v1967, 1.0
        %v1984 = vrcp.pop %v1968
        %v1985 = vmul.f32 %v1968, %v1984
        %v1986 = vsub.f32 1.0, %v1985
        %v1987 = vmul.f32 %v1984, %v1986
        %v1988 = vadd.f32 %v1984, %v1987
        %vm1989 = vweird.f32 %v1968
        %vm1990 = vweird.f32 %v1984
        %vm1991 = vmor %vm1989, %vm1990
        %v1992 = vsel %vm1991, %v1984, %v1988
        %v1993 = vand.u32 2147483647, %v1968
        %vm1994 = vcmp.eq.f32.partialorder %v1993, 8.507059e+37
        %v1995 = vand.u32 %v1968, 2147483648
        %v1996 = vor.u32 1.1754944e-38, %v1995
        %v1997 = vsel %vm1994, %v1996, %v1992
        %v1998 = vmul.f32 1.0, %v1997
        %v1999 = vrcp.pop %v1969
        %v2000 = vmul.f32 %v1969, %v1999
        %v2001 = vsub.f32 1.0, %v2000
        %v2002 = vmul.f32 %v1999, %v2001
        %v2003 = vadd.f32 %v1999, %v2002
        %vm2004 = vweird.f32 %v1969
        %vm2005 = vweird.f32 %v1999
        %vm2006 = vmor %vm2004, %vm2005
        %v2007 = vsel %vm2006, %v1999, %v2003
        %v2008 = vand.u32 2147483647, %v1969
        %vm2009 = vcmp.eq.f32.partialorder %v2008, 8.507059e+37
        %v2010 = vand.u32 %v1969, 2147483648
        %v2011 = vor.u32 1.1754944e-38, %v2010
        %v2012 = vsel %vm2009, %v2011, %v2007
        %v2013 = vmul.f32 1.0, %v2012
        %v2014 = vrcp.pop %v1970
        %v2015 = vmul.f32 %v1970, %v2014
        %v2016 = vsub.f32 1.0, %v2015
        %v2017 = vmul.f32 %v2014, %v2016
        %v2018 = vadd.f32 %v2014, %v2017
        %vm2019 = vweird.f32 %v1970
        %vm2020 = vweird.f32 %v2014
        %vm2021 = vmor %vm2019, %vm2020
        %v2022 = vsel %vm2021, %v2014, %v2018
        %v2023 = vand.u32 2147483647, %v1970
        %vm2024 = vcmp.eq.f32.partialorder %v2023, 8.507059e+37
        %v2025 = vand.u32 %v1970, 2147483648
        %v2026 = vor.u32 1.1754944e-38, %v2025
        %v2027 = vsel %vm2024, %v2026, %v2022
        %v2028 = vmul.f32 1.0, %v2027
        %v2029 = vrcp.pop %v1971
        %v2030 = vmul.f32 %v1971, %v2029
        %v2031 = vsub.f32 1.0, %v2030
        %v2032 = vmul.f32 %v2029, %v2031
        %v2033 = vadd.f32 %v2029, %v2032
        %vm2034 = vweird.f32 %v1971
        %vm2035 = vweird.f32 %v2029
        %vm2036 = vmor %vm2034, %vm2035
        %v2037 = vsel %vm2036, %v2029, %v2033
        %v2038 = vand.u32 2147483647, %v1971
        %vm2039 = vcmp.eq.f32.partialorder %v2038, 8.507059e+37
        %v2040 = vand.u32 %v1971, 2147483648
        %v2041 = vor.u32 1.1754944e-38, %v2040
        %v2042 = vsel %vm2039, %v2041, %v2037
        %v2043 = vmul.f32 1.0, %v2042
        %v2044 = vrcp.pop %v1972
        %v2045 = vmul.f32 %v1972, %v2044
        %v2046 = vsub.f32 1.0, %v2045
        %v2047 = vmul.f32 %v2044, %v2046
        %v2048 = vadd.f32 %v2044, %v2047
        %vm2049 = vweird.f32 %v1972
        %vm2050 = vweird.f32 %v2044
        %vm2051 = vmor %vm2049, %vm2050
        %v2052 = vsel %vm2051, %v2044, %v2048
        %v2053 = vand.u32 2147483647, %v1972
        %vm2054 = vcmp.eq.f32.partialorder %v2053, 8.507059e+37
        %v2055 = vand.u32 %v1972, 2147483648
        %v2056 = vor.u32 1.1754944e-38, %v2055
        %v2057 = vsel %vm2054, %v2056, %v2052
        %v2058 = vmul.f32 1.0, %v2057
        %v2059 = vrcp.pop %v1973
        %v2060 = vmul.f32 %v1973, %v2059
        %v2061 = vsub.f32 1.0, %v2060
        %v2062 = vmul.f32 %v2059, %v2061
        %v2063 = vadd.f32 %v2059, %v2062
        %vm2064 = vweird.f32 %v1973
        %vm2065 = vweird.f32 %v2059
        %vm2066 = vmor %vm2064, %vm2065
        %v2067 = vsel %vm2066, %v2059, %v2063
        %v2068 = vand.u32 2147483647, %v1973
        %vm2069 = vcmp.eq.f32.partialorder %v2068, 8.507059e+37
        %v2070 = vand.u32 %v1973, 2147483648
        %v2071 = vor.u32 1.1754944e-38, %v2070
        %v2072 = vsel %vm2069, %v2071, %v2067
        %v2073 = vmul.f32 1.0, %v2072
        %v2074 = vrcp.pop %v1974
        %v2075 = vmul.f32 %v1974, %v2074
        %v2076 = vsub.f32 1.0, %v2075
        %v2077 = vmul.f32 %v2074, %v2076
        %v2078 = vadd.f32 %v2074, %v2077
        %vm2079 = vweird.f32 %v1974
        %vm2080 = vweird.f32 %v2074
        %vm2081 = vmor %vm2079, %vm2080
        %v2082 = vsel %vm2081, %v2074, %v2078
        %v2083 = vand.u32 2147483647, %v1974
        %vm2084 = vcmp.eq.f32.partialorder %v2083, 8.507059e+37
        %v2085 = vand.u32 %v1974, 2147483648
        %v2086 = vor.u32 1.1754944e-38, %v2085
        %v2087 = vsel %vm2084, %v2086, %v2082
        %v2088 = vmul.f32 1.0, %v2087
        %v2089 = vrcp.pop %v1975
        %v2090 = vmul.f32 %v1975, %v2089
        %v2091 = vsub.f32 1.0, %v2090
        %v2092 = vmul.f32 %v2089, %v2091
        %v2093 = vadd.f32 %v2089, %v2092
        %vm2094 = vweird.f32 %v1975
        %vm2095 = vweird.f32 %v2089
        %vm2096 = vmor %vm2094, %vm2095
        %v2097 = vsel %vm2096, %v2089, %v2093
        %v2098 = vand.u32 2147483647, %v1975
        %vm2099 = vcmp.eq.f32.partialorder %v2098, 8.507059e+37
        %v2100 = vand.u32 %v1975, 2147483648
        %v2101 = vor.u32 1.1754944e-38, %v2100
        %v2102 = vsel %vm2099, %v2101, %v2097
        %v2103 = vmul.f32 1.0, %v2102
        %v2104 = vrcp.pop %v1976
        %v2105 = vmul.f32 %v1976, %v2104
        %v2106 = vsub.f32 1.0, %v2105
        %v2107 = vmul.f32 %v2104, %v2106
        %v2108 = vadd.f32 %v2104, %v2107
        %vm2109 = vweird.f32 %v1976
        %vm2110 = vweird.f32 %v2104
        %vm2111 = vmor %vm2109, %vm2110
        %v2112 = vsel %vm2111, %v2104, %v2108
        %v2113 = vand.u32 2147483647, %v1976
        %vm2114 = vcmp.eq.f32.partialorder %v2113, 8.507059e+37
        %v2115 = vand.u32 %v1976, 2147483648
        %v2116 = vor.u32 1.1754944e-38, %v2115
        %v2117 = vsel %vm2114, %v2116, %v2112
        %v2118 = vmul.f32 1.0, %v2117
        %v2119 = vrcp.pop %v1977
        %v2120 = vmul.f32 %v1977, %v2119
        %v2121 = vsub.f32 1.0, %v2120
        %v2122 = vmul.f32 %v2119, %v2121
        %v2123 = vadd.f32 %v2119, %v2122
        %vm2124 = vweird.f32 %v1977
        %vm2125 = vweird.f32 %v2119
        %vm2126 = vmor %vm2124, %vm2125
        %v2127 = vsel %vm2126, %v2119, %v2123
        %v2128 = vand.u32 2147483647, %v1977
        %vm2129 = vcmp.eq.f32.partialorder %v2128, 8.507059e+37
        %v2130 = vand.u32 %v1977, 2147483648
        %v2131 = vor.u32 1.1754944e-38, %v2130
        %v2132 = vsel %vm2129, %v2131, %v2127
        %v2133 = vmul.f32 1.0, %v2132
        %v2134 = vrcp.pop %v1978
        %v2135 = vmul.f32 %v1978, %v2134
        %v2136 = vsub.f32 1.0, %v2135
        %v2137 = vmul.f32 %v2134, %v2136
        %v2138 = vadd.f32 %v2134, %v2137
        %vm2139 = vweird.f32 %v1978
        %vm2140 = vweird.f32 %v2134
        %vm2141 = vmor %vm2139, %vm2140
        %v2142 = vsel %vm2141, %v2134, %v2138
        %v2143 = vand.u32 2147483647, %v1978
        %vm2144 = vcmp.eq.f32.partialorder %v2143, 8.507059e+37
        %v2145 = vand.u32 %v1978, 2147483648
        %v2146 = vor.u32 1.1754944e-38, %v2145
        %v2147 = vsel %vm2144, %v2146, %v2142
        %v2148 = vmul.f32 1.0, %v2147
        %v2149 = vrcp.pop %v1979
        %v2150 = vmul.f32 %v1979, %v2149
        %v2151 = vsub.f32 1.0, %v2150
        %v2152 = vmul.f32 %v2149, %v2151
        %v2153 = vadd.f32 %v2149, %v2152
        %vm2154 = vweird.f32 %v1979
        %vm2155 = vweird.f32 %v2149
        %vm2156 = vmor %vm2154, %vm2155
        %v2157 = vsel %vm2156, %v2149, %v2153
        %v2158 = vand.u32 2147483647, %v1979
        %vm2159 = vcmp.eq.f32.partialorder %v2158, 8.507059e+37
        %v2160 = vand.u32 %v1979, 2147483648
        %v2161 = vor.u32 1.1754944e-38, %v2160
        %v2162 = vsel %vm2159, %v2161, %v2157
        %v2163 = vmul.f32 1.0, %v2162
        %v2164 = vrcp.pop %v1980
        %v2165 = vmul.f32 %v1980, %v2164
        %v2166 = vsub.f32 1.0, %v2165
        %v2167 = vmul.f32 %v2164, %v2166
        %v2168 = vadd.f32 %v2164, %v2167
        %vm2169 = vweird.f32 %v1980
        %vm2170 = vweird.f32 %v2164
        %vm2171 = vmor %vm2169, %vm2170
        %v2172 = vsel %vm2171, %v2164, %v2168
        %v2173 = vand.u32 2147483647, %v1980
        %vm2174 = vcmp.eq.f32.partialorder %v2173, 8.507059e+37
        %v2175 = vand.u32 %v1980, 2147483648
        %v2176 = vor.u32 1.1754944e-38, %v2175
        %v2177 = vsel %vm2174, %v2176, %v2172
        %v2178 = vmul.f32 1.0, %v2177
        %v2179 = vrcp.pop %v1981
        %v2180 = vmul.f32 %v1981, %v2179
        %v2181 = vsub.f32 1.0, %v2180
        %v2182 = vmul.f32 %v2179, %v2181
        %v2183 = vadd.f32 %v2179, %v2182
        %vm2184 = vweird.f32 %v1981
        %vm2185 = vweird.f32 %v2179
        %vm2186 = vmor %vm2184, %vm2185
        %v2187 = vsel %vm2186, %v2179, %v2183
        %v2188 = vand.u32 2147483647, %v1981
        %vm2189 = vcmp.eq.f32.partialorder %v2188, 8.507059e+37
        %v2190 = vand.u32 %v1981, 2147483648
        %v2191 = vor.u32 1.1754944e-38, %v2190
        %v2192 = vsel %vm2189, %v2191, %v2187
        %v2193 = vmul.f32 1.0, %v2192
        %v2194 = vrcp.pop %v1982
        %v2195 = vmul.f32 %v1982, %v2194
        %v2196 = vsub.f32 1.0, %v2195
        %v2197 = vmul.f32 %v2194, %v2196
        %v2198 = vadd.f32 %v2194, %v2197
        %vm2199 = vweird.f32 %v1982
        %vm2200 = vweird.f32 %v2194
        %vm2201 = vmor %vm2199, %vm2200
        %v2202 = vsel %vm2201, %v2194, %v2198
        %v2203 = vand.u32 2147483647, %v1982
        %vm2204 = vcmp.eq.f32.partialorder %v2203, 8.507059e+37
        %v2205 = vand.u32 %v1982, 2147483648
        %v2206 = vor.u32 1.1754944e-38, %v2205
        %v2207 = vsel %vm2204, %v2206, %v2202
        %v2208 = vmul.f32 1.0, %v2207
        %v2209 = vrcp.pop %v1983
        %v2210 = vmul.f32 %v1983, %v2209
        %v2211 = vsub.f32 1.0, %v2210
        %v2212 = vmul.f32 %v2209, %v2211
        %v2213 = vadd.f32 %v2209, %v2212
        %vm2214 = vweird.f32 %v1983
        %vm2215 = vweird.f32 %v2209
        %vm2216 = vmor %vm2214, %vm2215
        %v2217 = vsel %vm2216, %v2209, %v2213
        %v2218 = vand.u32 2147483647, %v1983
        %vm2219 = vcmp.eq.f32.partialorder %v2218, 8.507059e+37
        %v2220 = vand.u32 %v1983, 2147483648
        %v2221 = vor.u32 1.1754944e-38, %v2220
        %v2222 = vsel %vm2219, %v2221, %v2217
        %v2223 = vmul.f32 1.0, %v2222
        %v2224 = vadd.f32 %v440, %v225
        %v2225 = vadd.f32 %v441, %v226
        %v2226 = vadd.f32 %v442, %v227
        %v2227 = vadd.f32 %v443, %v228
        %v2228 = vadd.f32 %v444, %v229
        %v2229 = vadd.f32 %v445, %v230
        %v2230 = vadd.f32 %v446, %v231
        %v2231 = vadd.f32 %v447, %v232
        %v2232 = vadd.f32 %v448, %v233
        %v2233 = vadd.f32 %v449, %v234
        %v2234 = vadd.f32 %v450, %v235
        %v2235 = vadd.f32 %v451, %v236
        %v2236 = vadd.f32 %v452, %v237
        %v2237 = vadd.f32 %v453, %v238
        %v2238 = vadd.f32 %v454, %v239
        %v2239 = vadd.f32 %v455, %v240
        %v2240 = vadd.f32 %v2224, %v513
        %v2241 = vadd.f32 %v2225, %v514
        %v2242 = vadd.f32 %v2226, %v515
        %v2243 = vadd.f32 %v2227, %v516
        %v2244 = vadd.f32 %v2228, %v517
        %v2245 = vadd.f32 %v2229, %v518
        %v2246 = vadd.f32 %v2230, %v519
        %v2247 = vadd.f32 %v2231, %v520
        %v2248 = vadd.f32 %v2232, %v521
        %v2249 = vadd.f32 %v2233, %v522
        %v2250 = vadd.f32 %v2234, %v523
        %v2251 = vadd.f32 %v2235, %v524
        %v2252 = vadd.f32 %v2236, %v525
        %v2253 = vadd.f32 %v2237, %v526
        %v2254 = vadd.f32 %v2238, %v527
        %v2255 = vadd.f32 %v2239, %v528
        %v2256 = vmul.f32 %v2240, 0.33333334
        %v2257 = vmul.f32 %v2241, 0.33333334
        %v2258 = vmul.f32 %v2242, 0.33333334
        %v2259 = vmul.f32 %v2243, 0.33333334
        %v2260 = vmul.f32 %v2244, 0.33333334
        %v2261 = vmul.f32 %v2245, 0.33333334
        %v2262 = vmul.f32 %v2246, 0.33333334
        %v2263 = vmul.f32 %v2247, 0.33333334
        %v2264 = vmul.f32 %v2248, 0.33333334
        %v2265 = vmul.f32 %v2249, 0.33333334
        %v2266 = vmul.f32 %v2250, 0.33333334
        %v2267 = vmul.f32 %v2251, 0.33333334
        %v2268 = vmul.f32 %v2252, 0.33333334
        %v2269 = vmul.f32 %v2253, 0.33333334
        %v2270 = vmul.f32 %v2254, 0.33333334
        %v2271 = vmul.f32 %v2255, 0.33333334
        %v2272 = vmax.f32 %v456, %v225
        %v2273 = vmax.f32 %v457, %v226
        %v2274 = vmax.f32 %v458, %v227
        %v2275 = vmax.f32 %v459, %v228
        %v2276 = vmax.f32 %v460, %v229
        %v2277 = vmax.f32 %v461, %v230
        %v2278 = vmax.f32 %v462, %v231
        %v2279 = vmax.f32 %v463, %v232
        %v2280 = vmax.f32 %v464, %v233
        %v2281 = vmax.f32 %v465, %v234
        %v2282 = vmax.f32 %v466, %v235
        %v2283 = vmax.f32 %v467, %v236
        %v2284 = vmax.f32 %v468, %v237
        %v2285 = vmax.f32 %v469, %v238
        %v2286 = vmax.f32 %v470, %v239
        %v2287 = vmax.f32 %v471, %v240
        %v2288 = vmax.f32 %v2272, %v529
        %v2289 = vmax.f32 %v2273, %v530
        %v2290 = vmax.f32 %v2274, %v531
        %v2291 = vmax.f32 %v2275, %v532
        %v2292 = vmax.f32 %v2276, %v533
        %v2293 = vmax.f32 %v2277, %v534
        %v2294 = vmax.f32 %v2278, %v535
        %v2295 = vmax.f32 %v2279, %v536
        %v2296 = vmax.f32 %v2280, %v537
        %v2297 = vmax.f32 %v2281, %v538
        %v2298 = vmax.f32 %v2282, %v539
        %v2299 = vmax.f32 %v2283, %v540
        %v2300 = vmax.f32 %v2284, %v541
        %v2301 = vmax.f32 %v2285, %v542
        %v2302 = vmax.f32 %v2286, %v543
        %v2303 = vmax.f32 %v2287, %v544
        %v2304 = vadd.f32 %v367, %v440
        %v2305 = vadd.f32 %v368, %v441
        %v2306 = vadd.f32 %v369, %v442
        %v2307 = vadd.f32 %v370, %v443
        %v2308 = vadd.f32 %v371, %v444
        %v2309 = vadd.f32 %v372, %v445
        %v2310 = vadd.f32 %v373, %v446
        %v2311 = vadd.f32 %v374, %v447
        %v2312 = vadd.f32 %v375, %v448
        %v2313 = vadd.f32 %v376, %v449
        %v2314 = vadd.f32 %v377, %v450
        %v2315 = vadd.f32 %v378, %v451
        %v2316 = vadd.f32 %v379, %v452
        %v2317 = vadd.f32 %v380, %v453
        %v2318 = vadd.f32 %v381, %v454
        %v2319 = vadd.f32 %v382, %v455
        %v2320 = vadd.f32 %v2304, %v225
        %v2321 = vadd.f32 %v2305, %v226
        %v2322 = vadd.f32 %v2306, %v227
        %v2323 = vadd.f32 %v2307, %v228
        %v2324 = vadd.f32 %v2308, %v229
        %v2325 = vadd.f32 %v2309, %v230
        %v2326 = vadd.f32 %v2310, %v231
        %v2327 = vadd.f32 %v2311, %v232
        %v2328 = vadd.f32 %v2312, %v233
        %v2329 = vadd.f32 %v2313, %v234
        %v2330 = vadd.f32 %v2314, %v235
        %v2331 = vadd.f32 %v2315, %v236
        %v2332 = vadd.f32 %v2316, %v237
        %v2333 = vadd.f32 %v2317, %v238
        %v2334 = vadd.f32 %v2318, %v239
        %v2335 = vadd.f32 %v2319, %v240
        %v2336 = vadd.f32 %v2320, %v513
        %v2337 = vadd.f32 %v2321, %v514
        %v2338 = vadd.f32 %v2322, %v515
        %v2339 = vadd.f32 %v2323, %v516
        %v2340 = vadd.f32 %v2324, %v517
        %v2341 = vadd.f32 %v2325, %v518
        %v2342 = vadd.f32 %v2326, %v519
        %v2343 = vadd.f32 %v2327, %v520
        %v2344 = vadd.f32 %v2328, %v521
        %v2345 = vadd.f32 %v2329, %v522
        %v2346 = vadd.f32 %v2330, %v523
        %v2347 = vadd.f32 %v2331, %v524
        %v2348 = vadd.f32 %v2332, %v525
        %v2349 = vadd.f32 %v2333, %v526
        %v2350 = vadd.f32 %v2334, %v527
        %v2351 = vadd.f32 %v2335, %v528
        %v2352 = vadd.f32 %v2336, %v586
        %v2353 = vadd.f32 %v2337, %v587
        %v2354 = vadd.f32 %v2338, %v588
        %v2355 = vadd.f32 %v2339, %v589
        %v2356 = vadd.f32 %v2340, %v590
        %v2357 = vadd.f32 %v2341, %v591
        %v2358 = vadd.f32 %v2342, %v592
        %v2359 = vadd.f32 %v2343, %v593
        %v2360 = vadd.f32 %v2344, %v594
        %v2361 = vadd.f32 %v2345, %v595
        %v2362 = vadd.f32 %v2346, %v596
        %v2363 = vadd.f32 %v2347, %v597
        %v2364 = vadd.f32 %v2348, %v598
        %v2365 = vadd.f32 %v2349, %v599
        %v2366 = vadd.f32 %v2350, %v600
        %v2367 = vadd.f32 %v2351, %v601
        %v2368 = vmul.f32 %v2352, 0.2
        %v2369 = vmul.f32 %v2353, 0.2
        %v2370 = vmul.f32 %v2354, 0.2
        %v2371 = vmul.f32 %v2355, 0.2
        %v2372 = vmul.f32 %v2356, 0.2
        %v2373 = vmul.f32 %v2357, 0.2
        %v2374 = vmul.f32 %v2358, 0.2
        %v2375 = vmul.f32 %v2359, 0.2
        %v2376 = vmul.f32 %v2360, 0.2
        %v2377 = vmul.f32 %v2361, 0.2
        %v2378 = vmul.f32 %v2362, 0.2
        %v2379 = vmul.f32 %v2363, 0.2
        %v2380 = vmul.f32 %v2364, 0.2
        %v2381 = vmul.f32 %v2365, 0.2
        %v2382 = vmul.f32 %v2366, 0.2
        %v2383 = vmul.f32 %v2367, 0.2
        %v2384 = vmax.f32 %v2288, %v383
        %v2385 = vmax.f32 %v2289, %v384
        %v2386 = vmax.f32 %v2290, %v385
        %v2387 = vmax.f32 %v2291, %v386
        %v2388 = vmax.f32 %v2292, %v387
        %v2389 = vmax.f32 %v2293, %v388
        %v2390 = vmax.f32 %v2294, %v389
        %v2391 = vmax.f32 %v2295, %v390
        %v2392 = vmax.f32 %v2296, %v391
        %v2393 = vmax.f32 %v2297, %v392
        %v2394 = vmax.f32 %v2298, %v393
        %v2395 = vmax.f32 %v2299, %v394
        %v2396 = vmax.f32 %v2300, %v395
        %v2397 = vmax.f32 %v2301, %v396
        %v2398 = vmax.f32 %v2302, %v397
        %v2399 = vmax.f32 %v2303, %v398
        %v2400 = vmax.f32 %v2384, %v602
        %v2401 = vmax.f32 %v2385, %v603
        %v2402 = vmax.f32 %v2386, %v604
        %v2403 = vmax.f32 %v2387, %v605
        %v2404 = vmax.f32 %v2388, %v606
        %v2405 = vmax.f32 %v2389, %v607
        %v2406 = vmax.f32 %v2390, %v608
        %v2407 = vmax.f32 %v2391, %v609
        %v2408 = vmax.f32 %v2392, %v610
        %v2409 = vmax.f32 %v2393, %v611
        %v2410 = vmax.f32 %v2394, %v612
        %v2411 = vmax.f32 %v2395, %v613
        %v2412 = vmax.f32 %v2396, %v614
        %v2413 = vmax.f32 %v2397, %v615
        %v2414 = vmax.f32 %v2398, %v616
        %v2415 = vmax.f32 %v2399, %v617
        %v2416 = vadd.f32 %v2256, %v2288
        %v2417 = vadd.f32 %v2257, %v2289
        %v2418 = vadd.f32 %v2258, %v2290
        %v2419 = vadd.f32 %v2259, %v2291
        %v2420 = vadd.f32 %v2260, %v2292
        %v2421 = vadd.f32 %v2261, %v2293
        %v2422 = vadd.f32 %v2262, %v2294
        %v2423 = vadd.f32 %v2263, %v2295
        %v2424 = vadd.f32 %v2264, %v2296
        %v2425 = vadd.f32 %v2265, %v2297
        %v2426 = vadd.f32 %v2266, %v2298
        %v2427 = vadd.f32 %v2267, %v2299
        %v2428 = vadd.f32 %v2268, %v2300
        %v2429 = vadd.f32 %v2269, %v2301
        %v2430 = vadd.f32 %v2270, %v2302
        %v2431 = vadd.f32 %v2271, %v2303
        %v2432 = vmul.f32 %v2416, %v1998
        %v2433 = vmul.f32 %v2417, %v2013
        %v2434 = vmul.f32 %v2418, %v2028
        %v2435 = vmul.f32 %v2419, %v2043
        %v2436 = vmul.f32 %v2420, %v2058
        %v2437 = vmul.f32 %v2421, %v2073
        %v2438 = vmul.f32 %v2422, %v2088
        %v2439 = vmul.f32 %v2423, %v2103
        %v2440 = vmul.f32 %v2424, %v2118
        %v2441 = vmul.f32 %v2425, %v2133
        %v2442 = vmul.f32 %v2426, %v2148
        %v2443 = vmul.f32 %v2427, %v2163
        %v2444 = vmul.f32 %v2428, %v2178
        %v2445 = vmul.f32 %v2429, %v2193
        %v2446 = vmul.f32 %v2430, %v2208
        %v2447 = vmul.f32 %v2431, %v2223
        %v2448 = vadd.f32 %v2368, %v2400
        %v2449 = vadd.f32 %v2369, %v2401
        %v2450 = vadd.f32 %v2370, %v2402
        %v2451 = vadd.f32 %v2371, %v2403
        %v2452 = vadd.f32 %v2372, %v2404
        %v2453 = vadd.f32 %v2373, %v2405
        %v2454 = vadd.f32 %v2374, %v2406
        %v2455 = vadd.f32 %v2375, %v2407
        %v2456 = vadd.f32 %v2376, %v2408
        %v2457 = vadd.f32 %v2377, %v2409
        %v2458 = vadd.f32 %v2378, %v2410
        %v2459 = vadd.f32 %v2379, %v2411
        %v2460 = vadd.f32 %v2380, %v2412
        %v2461 = vadd.f32 %v2381, %v2413
        %v2462 = vadd.f32 %v2382, %v2414
        %v2463 = vadd.f32 %v2383, %v2415
        %2480 = vrot.lane.b32.xlu0 %v1998, 96
        %v2481 = vpop.permute.xlu0 %2480
        %2482 = vrot.lane.b32.xlu0 %v2013, 96
        %v2483 = vpop.permute.xlu0 %2482
        %2484 = vrot.lane.b32.xlu0 %v2028, 96
        %v2485 = vpop.permute.xlu0 %2484
        %2486 = vrot.lane.b32.xlu0 %v2043, 96
        %v2487 = vpop.permute.xlu0 %2486
        %2488 = vrot.lane.b32.xlu0 %v2058, 96
        %v2489 = vpop.permute.xlu0 %2488
        %2490 = vrot.lane.b32.xlu0 %v2073, 96
        %v2491 = vpop.permute.xlu0 %2490
        %2492 = vrot.lane.b32.xlu0 %v2088, 96
        %v2493 = vpop.permute.xlu0 %2492
        %2494 = vrot.lane.b32.xlu0 %v2103, 96
        %v2495 = vpop.permute.xlu0 %2494
        %2496 = vrot.lane.b32.xlu0 %v2118, 96
        %v2497 = vpop.permute.xlu0 %2496
        %2498 = vrot.lane.b32.xlu0 %v2133, 96
        %v2499 = vpop.permute.xlu0 %2498
        %2500 = vrot.lane.b32.xlu0 %v2148, 96
        %v2501 = vpop.permute.xlu0 %2500
        %2502 = vrot.lane.b32.xlu0 %v2163, 96
        %v2503 = vpop.permute.xlu0 %2502
        %2504 = vrot.lane.b32.xlu0 %v2178, 96
        %v2505 = vpop.permute.xlu0 %2504
        %2506 = vrot.lane.b32.xlu0 %v2193, 96
        %v2507 = vpop.permute.xlu0 %2506
        %2508 = vrot.lane.b32.xlu0 %v2208, 96
        %v2509 = vpop.permute.xlu0 %2508
        %2510 = vrot.lane.b32.xlu0 %v2223, 96
        %v2511 = vpop.permute.xlu0 %2510
        %v2528 = vmul.f32 %v2448, %v2481
        %v2529 = vmul.f32 %v2449, %v2483
        %v2530 = vmul.f32 %v2450, %v2485
        %v2531 = vmul.f32 %v2451, %v2487
        %v2532 = vmul.f32 %v2452, %v2489
        %v2533 = vmul.f32 %v2453, %v2491
        %v2534 = vmul.f32 %v2454, %v2493
        %v2535 = vmul.f32 %v2455, %v2495
        %v2536 = vmul.f32 %v2456, %v2497
        %v2537 = vmul.f32 %v2457, %v2499
        %v2538 = vmul.f32 %v2458, %v2501
        %v2539 = vmul.f32 %v2459, %v2503
        %v2540 = vmul.f32 %v2460, %v2505
        %v2541 = vmul.f32 %v2461, %v2507
        %v2542 = vmul.f32 %v2462, %v2509
        %v2543 = vmul.f32 %v2463, %v2511
        %v2544 = vadd.f32 %v2432, %v2528
        %v2545 = vadd.f32 %v2433, %v2529
        %v2546 = vadd.f32 %v2434, %v2530
        %v2547 = vadd.f32 %v2435, %v2531
        %v2548 = vadd.f32 %v2436, %v2532
        %v2549 = vadd.f32 %v2437, %v2533
        %v2550 = vadd.f32 %v2438, %v2534
        %v2551 = vadd.f32 %v2439, %v2535
        %v2552 = vadd.f32 %v2440, %v2536
        %v2553 = vadd.f32 %v2441, %v2537
        %v2554 = vadd.f32 %v2442, %v2538
        %v2555 = vadd.f32 %v2443, %v2539
        %v2556 = vadd.f32 %v2444, %v2540
        %v2557 = vadd.f32 %v2445, %v2541
        %v2558 = vadd.f32 %v2446, %v2542
        %v2559 = vadd.f32 %v2447, %v2543
        %v2560 = vsel %vm746, %v2544, -inf
        %v2561 = vrot.slane %v2560, 4
        %v2562 = vmax.f32 %v2560, %v2561
        %v2563 = vrot.slane %v2562, 2
        %v2564 = vmax.f32 %v2562, %v2563
        %v2565 = vrot.slane %v2564, 1
        %v2566 = vmax.f32 %v2564, %v2565
        %v2567 = vsel %vm746, %v2546, -inf
        %v2568 = vrot.slane %v2567, 4
        %v2569 = vmax.f32 %v2567, %v2568
        %v2570 = vrot.slane %v2569, 2
        %v2571 = vmax.f32 %v2569, %v2570
        %v2572 = vrot.slane %v2571, 1
        %v2573 = vmax.f32 %v2571, %v2572
        %v2574 = vsel %vm746, %v2548, -inf
        %v2575 = vrot.slane %v2574, 4
        %v2576 = vmax.f32 %v2574, %v2575
        %v2577 = vrot.slane %v2576, 2
        %v2578 = vmax.f32 %v2576, %v2577
        %v2579 = vrot.slane %v2578, 1
        %v2580 = vmax.f32 %v2578, %v2579
        %v2581 = vsel %vm746, %v2550, -inf
        %v2582 = vrot.slane %v2581, 4
        %v2583 = vmax.f32 %v2581, %v2582
        %v2584 = vrot.slane %v2583, 2
        %v2585 = vmax.f32 %v2583, %v2584
        %v2586 = vrot.slane %v2585, 1
        %v2587 = vmax.f32 %v2585, %v2586
        %v2588 = vsel %vm746, %v2552, -inf
        %v2589 = vrot.slane %v2588, 4
        %v2590 = vmax.f32 %v2588, %v2589
        %v2591 = vrot.slane %v2590, 2
        %v2592 = vmax.f32 %v2590, %v2591
        %v2593 = vrot.slane %v2592, 1
        %v2594 = vmax.f32 %v2592, %v2593
        %v2595 = vsel %vm746, %v2554, -inf
        %v2596 = vrot.slane %v2595, 4
        %v2597 = vmax.f32 %v2595, %v2596
        %v2598 = vrot.slane %v2597, 2
        %v2599 = vmax.f32 %v2597, %v2598
        %v2600 = vrot.slane %v2599, 1
        %v2601 = vmax.f32 %v2599, %v2600
        %v2602 = vsel %vm746, %v2556, -inf
        %v2603 = vrot.slane %v2602, 4
        %v2604 = vmax.f32 %v2602, %v2603
        %v2605 = vrot.slane %v2604, 2
        %v2606 = vmax.f32 %v2604, %v2605
        %v2607 = vrot.slane %v2606, 1
        %v2608 = vmax.f32 %v2606, %v2607
        %v2609 = vsel %vm746, %v2558, -inf
        %v2610 = vrot.slane %v2609, 4
        %v2611 = vmax.f32 %v2609, %v2610
        %v2612 = vrot.slane %v2611, 2
        %v2613 = vmax.f32 %v2611, %v2612
        %v2614 = vrot.slane %v2613, 1
        %v2615 = vmax.f32 %v2613, %v2614
        %vm2616 = vcmask 253952
        %2617 = vst.msk [vmem:[%s202] sm:$0x1] %vm2616, %v2566
        %2618 = vst.msk [vmem:[%s202 + $0x2] sm:$0x1] %vm2616, %v2573
        %2619 = vst.msk [vmem:[%s202 + $0x4] sm:$0x1] %vm2616, %v2580
        %2620 = vst.msk [vmem:[%s202 + $0x6] sm:$0x1] %vm2616, %v2587
        %2621 = vst.msk [vmem:[%s202 + $0x8] sm:$0x1] %vm2616, %v2594
        %2622 = vst.msk [vmem:[%s202 + $0xa] sm:$0x1] %vm2616, %v2601
        %2623 = vst.msk [vmem:[%s202 + $0xc] sm:$0x1] %vm2616, %v2608
        %2624 = vst.msk [vmem:[%s202 + $0xe] sm:$0x1] %vm2616, %v2615
        %v2625 = vsel %vm746, %v2545, -inf
        %v2626 = vrot.slane %v2625, 4
        %v2627 = vmax.f32 %v2625, %v2626
        %v2628 = vrot.slane %v2627, 2
        %v2629 = vmax.f32 %v2627, %v2628
        %v2630 = vrot.slane %v2629, 1
        %v2631 = vmax.f32 %v2629, %v2630
        %v2632 = vsel %vm746, %v2547, -inf
        %v2633 = vrot.slane %v2632, 4
        %v2634 = vmax.f32 %v2632, %v2633
        %v2635 = vrot.slane %v2634, 2
        %v2636 = vmax.f32 %v2634, %v2635
        %v2637 = vrot.slane %v2636, 1
        %v2638 = vmax.f32 %v2636, %v2637
        %v2639 = vsel %vm746, %v2549, -inf
        %v2640 = vrot.slane %v2639, 4
        %v2641 = vmax.f32 %v2639, %v2640
        %v2642 = vrot.slane %v2641, 2
        %v2643 = vmax.f32 %v2641, %v2642
        %v2644 = vrot.slane %v2643, 1
        %v2645 = vmax.f32 %v2643, %v2644
        %v2646 = vsel %vm746, %v2551, -inf
        %v2647 = vrot.slane %v2646, 4
        %v2648 = vmax.f32 %v2646, %v2647
        %v2649 = vrot.slane %v2648, 2
        %v2650 = vmax.f32 %v2648, %v2649
        %v2651 = vrot.slane %v2650, 1
        %v2652 = vmax.f32 %v2650, %v2651
        %v2653 = vsel %vm746, %v2553, -inf
        %v2654 = vrot.slane %v2653, 4
        %v2655 = vmax.f32 %v2653, %v2654
        %v2656 = vrot.slane %v2655, 2
        %v2657 = vmax.f32 %v2655, %v2656
        %v2658 = vrot.slane %v2657, 1
        %v2659 = vmax.f32 %v2657, %v2658
        %v2660 = vsel %vm746, %v2555, -inf
        %v2661 = vrot.slane %v2660, 4
        %v2662 = vmax.f32 %v2660, %v2661
        %v2663 = vrot.slane %v2662, 2
        %v2664 = vmax.f32 %v2662, %v2663
        %v2665 = vrot.slane %v2664, 1
        %v2666 = vmax.f32 %v2664, %v2665
        %v2667 = vsel %vm746, %v2557, -inf
        %v2668 = vrot.slane %v2667, 4
        %v2669 = vmax.f32 %v2667, %v2668
        %v2670 = vrot.slane %v2669, 2
        %v2671 = vmax.f32 %v2669, %v2670
        %v2672 = vrot.slane %v2671, 1
        %v2673 = vmax.f32 %v2671, %v2672
        %v2674 = vsel %vm746, %v2559, -inf
        %v2675 = vrot.slane %v2674, 4
        %v2676 = vmax.f32 %v2674, %v2675
        %v2677 = vrot.slane %v2676, 2
        %v2678 = vmax.f32 %v2676, %v2677
        %v2679 = vrot.slane %v2678, 1
        %v2680 = vmax.f32 %v2678, %v2679
        %2681 = vst.msk [vmem:[%s202 + $0x1] sm:$0x1] %vm2616, %v2631
        %2682 = vst.msk [vmem:[%s202 + $0x3] sm:$0x1] %vm2616, %v2638
        %2683 = vst.msk [vmem:[%s202 + $0x5] sm:$0x1] %vm2616, %v2645
        %2684 = vst.msk [vmem:[%s202 + $0x7] sm:$0x1] %vm2616, %v2652
        %2685 = vst.msk [vmem:[%s202 + $0x9] sm:$0x1] %vm2616, %v2659
        %2686 = vst.msk [vmem:[%s202 + $0xb] sm:$0x1] %vm2616, %v2666
        %2687 = vst.msk [vmem:[%s202 + $0xd] sm:$0x1] %vm2616, %v2673
        %2688 = vst.msk [vmem:[%s202 + $0xf] sm:$0x1] %vm2616, %v2680
        %s2689 = sand.u32 %s103, 1
        %s2690 = scalar_lea.sflag [#allocation3], %s2689
        %s2691 = sand.u32 %s103, 1
        %s2692 = smul.addr %s2691, 16
        %s2693 = scalar_lea.vmem [#allocation2], %s2692
        // Predicated region
        $region33: #{tpu_custom_call.1} parent=31 // pred_check
          %p2694 = pneg %p113
        $region34: #{tpu_custom_call.1} parent=31 // pred_check_branch
          %2696 = sbr.rel (%p2694) target = $region36
        $region35: #{tpu_custom_call.1} parent=31 // pred_region
          %s2697 = smul.u32 8, %s17
          %2699 = vsyncadd %s2690, 0
          %s2700 = smul.addr %s2697, 2
          %s2701 = scalar_lea.hbm %s3, %s2700
          %s2702 = sshll.u32 %s2693, 4
          %s2703 = int_to_ptr.vmem [resolvable:$true] %s2702
          %s2704 = sshll.u32 %s2701, 4
          %s2705 = int_to_ptr.hbm [resolvable:$true] %s2704
          %2710 = dma.vmem_to_hbm [thread:$0]  %s2703, 256, %s2705, %s2690, 32, 32, 2
        $region36: #{tpu_custom_call.1} parent=31 // pred_fallthru
          _
      $region32: #{tpu_custom_call.1} parent=5 // pred_fallthru
        _
      %p2711 = scmp.le.s32.totalorder 2, %s12
      // Predicated region
      $region37: #{tpu_custom_call.1} parent=5 // pred_check
        %p2712 = pneg %p2711
      $region38: #{tpu_custom_call.1} parent=5 // pred_check_branch
        %2714 = sbr.rel (%p2712) target = $region40
      $region39: #{tpu_custom_call.1} parent=5 // pred_region
        %s2715 = ssub.s32 %s12, 2
        // Predicated region
        $region41: #{tpu_custom_call.1} parent=39 // pred_check
          %p2716 = pneg %p119
        $region42: #{tpu_custom_call.1} parent=39 // pred_check_branch
          %2718 = sbr.rel (%p2716) target = $region44
        $region43: #{tpu_custom_call.1} parent=39 // pred_region
          %s2719 = sand.u32 %s104, 1
          %s2720 = scalar_lea.sflag [#allocation3], %s2719
          %s2721 = sand.u32 %s104, 1
          %s2722 = smul.addr %s2721, 16
          %s2723 = scalar_lea.vmem [#allocation2], %s2722
          %2725 = dma.done %s2720, 256
        $region44: #{tpu_custom_call.1} parent=39 // pred_fallthru
          _
      $region40: #{tpu_custom_call.1} parent=5 // pred_fallthru
        _
    $region6: #{tpu_custom_call.1} parent=1 // loop_footer
      %s16 = sadd.s32 1, %s12
    $region7: #{tpu_custom_call.1} parent=1 // loop_footer_branch
      %11 = sbr.rel target = $region3
    $region8: #{tpu_custom_call.1} parent=1 // loop_exit
      _
    %2726 = vsyncpa [#allocation3], 1
    %s2727 = scalar_lea.sflag [#allocation3], 1
    %2728 = vsyncpa %s2727, 1

</llo_original>
